<compile_context>
chip_gen: v6e
topology: v6e:2x2x1
jax: 0.10.0
libtpu: 0.0.40
codegen_flags: <defaults>
</compile_context>

<pallas_src>
import jax
import jax.numpy as jnp
from jax.experimental import pallas as pl
from jax.experimental.pallas import tpu as pltpu


def compose_kernel(a_ref, x_ref, w0_ref, w1_ref, w2_ref, w3_ref, o_ref):
    """Fused forward of Compose([A, Multiply(B, a), Add([C, D])])(x) for one row tile."""
    x = x_ref[...]  # (TM, H) bf16

    # --- innermost linop (applied first): Add([C, D]) -> x@W2 + x@W3 == x@(W2+W3)
    w23 = w2_ref[...] + w3_ref[...]                       # cheap VPU op, saves a matmul
    t = jnp.dot(x, w23, preferred_element_type=jnp.float32)   # f32 accumulation

    # --- middle linop: Multiply(B, a) -> (a * t) @ W1   (scale in f32, cast at dot)
    a = a_ref[0]
    u = jnp.dot((a * t).astype(x.dtype), w1_ref[...],
                preferred_element_type=jnp.float32)

    # --- outermost linop: A -> u @ W0
    o_ref[...] = jnp.dot(u.astype(x.dtype), w0_ref[...],
                         preferred_element_type=jnp.float32).astype(o_ref.dtype)


def compose_forward(x, w0, w1, w2, w3, a, *, tm=256):
    """Wrapper: batch-tiled grid, weights VMEM-resident, scalar `a` via SMEM prefetch."""
    B, H = x.shape
    assert B % tm == 0, "batch must be a multiple of the row tile"
    a_arr = jnp.asarray([a], dtype=jnp.float32)  # scalar -> SMEM (scalar prefetch)

    x_spec = pl.BlockSpec((tm, H), lambda i, a_ref: (i, 0))
    w_spec = pl.BlockSpec((H, H), lambda i, a_ref: (0, 0))  # same block every step

    itemsize_w = jnp.dtype(w0.dtype).itemsize
    itemsize_x = jnp.dtype(x.dtype).itemsize
    cost = pl.CostEstimate(
        flops=2 * B * H * H * 3 + B * H,      # 3 matmuls + scale
        transcendentals=0,
        bytes_accessed=B * H * itemsize_x + 4 * H * H * itemsize_w + B * H * 4,
    )

    return pl.pallas_call(
        compose_kernel,
        out_shape=jax.ShapeDtypeStruct((B, H), jnp.float32),
        grid_spec=pltpu.PrefetchScalarGridSpec(
            num_scalar_prefetch=1,
            grid=(B // tm,),
            in_specs=[x_spec, w_spec, w_spec, w_spec, w_spec],
            out_specs=pl.BlockSpec((tm, H), lambda i, a_ref: (i, 0)),
        ),
        compiler_params=pltpu.CompilerParams(
            dimension_semantics=("parallel",),   # megacore sharding on v7x
        ),
        cost_estimate=cost,
    )(a_arr, x, w0, w1, w2, w3)


def compose_reference(x, w0, w1, w2, w3, a):
    """Plain-JAX (f32) reference mirroring Compose.forward exactly."""
    f32 = jnp.float32
    x, w0, w1, w2, w3 = (t.astype(f32) for t in (x, w0, w1, w2, w3))
    out = x
    # linops[::-1] : Add([C, D]) first, then Multiply(B, a), then A
    out = jnp.dot(out, w2) + jnp.dot(out, w3)   # Add.forward
    out = jnp.dot(a * out, w1)                  # Multiply.forward then B
    out = jnp.dot(out, w0)                      # A
    return out


if __name__ == "__main__":
    key = jax.random.PRNGKey(0)
    batch, hidden = 1024, 256  # lane-aligned; 4 row tiles of 256

    k_x, k0, k1, k2, k3 = jax.random.split(key, 5)
    scale = 1.0 / jnp.sqrt(hidden)
    x = jax.random.normal(k_x, (batch, hidden), dtype=jnp.float32).astype(jnp.bfloat16)
    w0 = (jax.random.normal(k0, (hidden, hidden), jnp.float32) * scale).astype(jnp.bfloat16)
    w1 = (jax.random.normal(k1, (hidden, hidden), jnp.float32) * scale).astype(jnp.bfloat16)
    w2 = (jax.random.normal(k2, (hidden, hidden), jnp.float32) * scale).astype(jnp.bfloat16)
    w3 = (jax.random.normal(k3, (hidden, hidden), jnp.float32) * scale).astype(jnp.bfloat16)
    a = 0.5

    out = compose_forward(x, w0, w1, w2, w3, a)
    out = jax.block_until_ready(out)

    ref = compose_reference(x, w0, w1, w2, w3, a)
    assert out.shape == (batch, hidden)
    # bf16 intermediates between the chained matmuls -> loosened tolerance vs f32 ref
    assert jnp.allclose(out, ref, rtol=2e-2, atol=2e-2), "mismatch vs reference"

    print("KERNEL_OK")
</pallas_src>

<mosaic_0001>
module attributes {stable_mosaic.version = 11 : i64} {
  func.func @compose_kernel(%arg0: i32, %arg1: memref<1xf32, #tpu.memory_space<smem>>, %arg2: memref<256x256xbf16, #tpu.memory_space<vmem>>, %arg3: memref<256x256xbf16, #tpu.memory_space<vmem>>, %arg4: memref<256x256xbf16, #tpu.memory_space<vmem>>, %arg5: memref<256x256xbf16, #tpu.memory_space<vmem>>, %arg6: memref<256x256xbf16, #tpu.memory_space<vmem>>, %arg7: memref<256x256xf32, #tpu.memory_space<vmem>>) attributes {dimension_semantics = [#tpu.dimension_semantics<parallel>], iteration_bounds = array<i64: 4>, scalar_prefetch = 1 : i64, scratch_operands = 0 : i64, tpu.core_type = #tpu.core_type<tc>, window_params = [{transform_indices = @transform_0, window_bounds = array<i64: 256, 256>}, {pipeline_mode = #tpu.pipeline_mode<synchronous>, transform_indices = @transform_1, window_bounds = array<i64: 256, 256>}, {pipeline_mode = #tpu.pipeline_mode<synchronous>, transform_indices = @transform_2, window_bounds = array<i64: 256, 256>}, {pipeline_mode = #tpu.pipeline_mode<synchronous>, transform_indices = @transform_3, window_bounds = array<i64: 256, 256>}, {pipeline_mode = #tpu.pipeline_mode<synchronous>, transform_indices = @transform_4, window_bounds = array<i64: 256, 256>}, {transform_indices = @transform_5, window_bounds = array<i64: 256, 256>}]} {
    %c0 = arith.constant 0 : index
    %c0_0 = arith.constant 0 : index
    %0 = vector.load %arg2[%c0, %c0_0] : memref<256x256xbf16, #tpu.memory_space<vmem>>, vector<256x256xbf16>
    %c0_1 = arith.constant 0 : index
    %c0_2 = arith.constant 0 : index
    %1 = vector.load %arg5[%c0_1, %c0_2] : memref<256x256xbf16, #tpu.memory_space<vmem>>, vector<256x256xbf16>
    %c0_3 = arith.constant 0 : index
    %c0_4 = arith.constant 0 : index
    %2 = vector.load %arg6[%c0_3, %c0_4] : memref<256x256xbf16, #tpu.memory_space<vmem>>, vector<256x256xbf16>
    %3 = arith.addf %1, %2 : vector<256x256xbf16>
    %cst = arith.constant dense<0.000000e+00> : vector<256x256xf32>
    %4 = tpu.matmul %0, %3, %cst {dimension_numbers = #tpu.dot_dimension_numbers<[1], [0], [0], [1], [0, 0, 1, 1], [], []>} : vector<256x256xbf16>, vector<256x256xbf16>, vector<256x256xf32> -> vector<256x256xf32>
    %c0_5 = arith.constant 0 : index
    %5 = memref.load %arg1[%c0_5] : memref<1xf32, #tpu.memory_space<smem>>
    %6 = vector.broadcast %5 : f32 to vector<256x256xf32>
    %7 = arith.mulf %6, %4 : vector<256x256xf32>
    %8 = arith.truncf %7 : vector<256x256xf32> to vector<256x256xbf16>
    %c0_6 = arith.constant 0 : index
    %c0_7 = arith.constant 0 : index
    %9 = vector.load %arg4[%c0_6, %c0_7] : memref<256x256xbf16, #tpu.memory_space<vmem>>, vector<256x256xbf16>
    %cst_8 = arith.constant dense<0.000000e+00> : vector<256x256xf32>
    %10 = tpu.matmul %8, %9, %cst_8 {dimension_numbers = #tpu.dot_dimension_numbers<[1], [0], [0], [1], [0, 0, 1, 1], [], []>} : vector<256x256xbf16>, vector<256x256xbf16>, vector<256x256xf32> -> vector<256x256xf32>
    %11 = arith.truncf %10 : vector<256x256xf32> to vector<256x256xbf16>
    %c0_9 = arith.constant 0 : index
    %c0_10 = arith.constant 0 : index
    %12 = vector.load %arg3[%c0_9, %c0_10] : memref<256x256xbf16, #tpu.memory_space<vmem>>, vector<256x256xbf16>
    %cst_11 = arith.constant dense<0.000000e+00> : vector<256x256xf32>
    %13 = tpu.matmul %11, %12, %cst_11 {dimension_numbers = #tpu.dot_dimension_numbers<[1], [0], [0], [1], [0, 0, 1, 1], [], []>} : vector<256x256xbf16>, vector<256x256xbf16>, vector<256x256xf32> -> vector<256x256xf32>
    %c0_12 = arith.constant 0 : index
    %c0_13 = arith.constant 0 : index
    %14 = vector.load %arg7[%c0_12, %c0_13] : memref<256x256xf32, #tpu.memory_space<vmem>>, vector<256x256xf32>
    tpu.vector_store %arg7[%c0_12, %c0_13], %13 {strides = array<i32>} : memref<256x256xf32, #tpu.memory_space<vmem>>, vector<256x256xf32>,
    return
  }
  func.func @transform_0(%arg0: i32, %arg1: memref<1xf32, #tpu.memory_space<smem>>) -> (i32, i32) {
    %c0_i32 = arith.constant 0 : i32
    %c0_i32_0 = arith.constant 0 : i32
    return %arg0, %c0_i32 : i32, i32
  }
  func.func @transform_1(%arg0: i32, %arg1: memref<1xf32, #tpu.memory_space<smem>>) -> (i32, i32) {
    %c0_i32 = arith.constant 0 : i32
    %c0_i32_0 = arith.constant 0 : i32
    %c0_i32_1 = arith.constant 0 : i32
    return %c0_i32, %c0_i32_0 : i32, i32
  }
  func.func @transform_2(%arg0: i32, %arg1: memref<1xf32, #tpu.memory_space<smem>>) -> (i32, i32) {
    %c0_i32 = arith.constant 0 : i32
    %c0_i32_0 = arith.constant 0 : i32
    %c0_i32_1 = arith.constant 0 : i32
    return %c0_i32, %c0_i32_0 : i32, i32
  }
  func.func @transform_3(%arg0: i32, %arg1: memref<1xf32, #tpu.memory_space<smem>>) -> (i32, i32) {
    %c0_i32 = arith.constant 0 : i32
    %c0_i32_0 = arith.constant 0 : i32
    %c0_i32_1 = arith.constant 0 : i32
    return %c0_i32, %c0_i32_0 : i32, i32
  }
  func.func @transform_4(%arg0: i32, %arg1: memref<1xf32, #tpu.memory_space<smem>>) -> (i32, i32) {
    %c0_i32 = arith.constant 0 : i32
    %c0_i32_0 = arith.constant 0 : i32
    %c0_i32_1 = arith.constant 0 : i32
    return %c0_i32, %c0_i32_0 : i32, i32
  }
  func.func @transform_5(%arg0: i32, %arg1: memref<1xf32, #tpu.memory_space<smem>>) -> (i32, i32) {
    %c0_i32 = arith.constant 0 : i32
    %c0_i32_0 = arith.constant 0 : i32
    return %arg0, %c0_i32 : i32, i32
  }
}

</mosaic_0001>

<llo_original>
// kernel: tpu_custom_call.1
$region0: #{tpu_custom_call.1}
  #allocation0 [shape = 'u32[]', space=smem, size = 0x4, offset = 0x4, fixed_abs, tag = 'smem constant byte address 0x4 - core index']
  #allocation1 [shape = 'u32[144,128]{1,0:T(1,128)}', space=vmem, size = 0x12000, scoped, tag = 'internal scratch']
  #allocation2 [shape = 's32[1]{0}', space=sflag, size = 0x4, scoped, tag = 'scoped memory for tpu_custom_call.1']
  #allocation3 [shape = 'f32[1]{0:T(128)S(6)}', space=smem, size = 0x200, scoped, tag = 'prefetched SMEM operand 0']
  %s0 = inlined_call_operand.<no memory space> [shape: f32[1], index: 0, kind: input, shape index: {}]
  %s1 = inlined_call_operand.hbm [shape: bf16[1024,256], index: 1, kind: input, shape index: {}]
  %s2 = inlined_call_operand.hbm [shape: bf16[256,256], index: 2, kind: input, shape index: {}]
  %s3 = inlined_call_operand.hbm [shape: bf16[256,256], index: 3, kind: input, shape index: {}]
  %s4 = inlined_call_operand.hbm [shape: bf16[256,256], index: 4, kind: input, shape index: {}]
  %s5 = inlined_call_operand.hbm [shape: bf16[256,256], index: 5, kind: input, shape index: {}]
  %s6 = inlined_call_operand.hbm [shape: f32[1024,256], index: 6, kind: output, shape index: {}]
  %s7 = sld [smem:[#allocation0]]
  $region73: #{tpu_custom_call.1} parent=0
    _
  %s9 = ssub.s32 1, %s7
  %s10 = scalar_select 0, %s9, %s7
  %11 = sst [smem:[#allocation3]] %s0
  $region1: #{tpu_custom_call.1} parent=0
    #allocation4 [shape = 'u8[262144]{0}', space=vmem, size = 0x40000, scoped, tag = 'input window, operand 1']
    #allocation5 [shape = 's32[2]{0}', space=sflag, size = 0x8, scoped, tag = 'scoped memory for tpu_custom_call.1']
    #allocation6 [shape = 's32[2]{0}', space=sflag, size = 0x8, scoped, tag = 'scoped memory for tpu_custom_call.1']
    #allocation7 [shape = 'u8[131072]{0}', space=vmem, size = 0x20000, scoped, tag = 'input window, operand 2, single buffered']
    #allocation8 [shape = 's32[1]{0}', space=sflag, size = 0x4, scoped, tag = 'scoped memory for tpu_custom_call.1']
    #allocation9 [shape = 'u8[131072]{0}', space=vmem, size = 0x20000, scoped, tag = 'input window, operand 3, single buffered']
    #allocation10 [shape = 'u8[131072]{0}', space=vmem, size = 0x20000, scoped, tag = 'input window, operand 4, single buffered']
    #allocation11 [shape = 's32[1]{0}', space=sflag, size = 0x4, scoped, tag = 'scoped memory for tpu_custom_call.1']
    #allocation12 [shape = 'u8[131072]{0}', space=vmem, size = 0x20000, scoped, tag = 'input window, operand 5, single buffered']
    #allocation13 [shape = 'u8[524288]{0}', space=vmem, size = 0x80000, scoped, tag = 'output window, operand 0']
    %12 = vsyncpa [#allocation5], 0
    %s13 = scalar_lea.sflag [#allocation5], 1
    %14 = vsyncpa %s13, 0
    %15 = vsyncpa [#allocation8], 0
    %16 = vsyncpa [#allocation11], 0
    %17 = vsyncpa [#allocation6], 0
    %s18 = scalar_lea.sflag [#allocation6], 1
    %19 = vsyncpa %s18, 0
    loop: start=0, step=1, limit=6
    $region2: #{tpu_custom_call.1} parent=1 // loop_pre_header
      _
    $region3: #{tpu_custom_call.1} parent=1 // loop_header
      %s21 = sphi 0, %s25
      %p22 = scmp.ge.s32.totalorder %s21, 6
      %s31 = sphi 0, %s33
      %s34 = sphi 0, %s31
      %s35 = sphi 0, %s34
      %s51 = sphi 0, %s35
      %s55 = sphi 0, %s55
      %s57 = sphi 0, %s55
      %s58 = sphi 0, %s57
      %s72 = sphi 0, %s58
      %s76 = sphi 0, %s76
      %s78 = sphi 0, %s76
      %s79 = sphi 0, %s78
      %s93 = sphi 0, %s79
      %s97 = sphi 0, %s97
      %s99 = sphi 0, %s97
      %s100 = sphi 0, %s99
      %s114 = sphi 0, %s100
      %s118 = sphi 0, %s118
      %s120 = sphi 0, %s118
      %s121 = sphi 0, %s120
      %s135 = sphi 0, %s121
      %s141 = sphi 0, %s143
      %s144 = sphi 0, %s141
      %s145 = sphi 0, %s144
      %s161 = sphi 0, %s145
    $region4: #{tpu_custom_call.1} parent=1 // loop_header_branch
      %24 = sbr.rel (%p22) target = $region8
    $region5: #{tpu_custom_call.1} parent=1 // loop_body
      %s26 = ssub.s32 %s21, 1
      %s27 = ssub.s32 %s21, 2
      %s28 = sadd.s32 %s21, 1
      %s29 = ssub.s32 %s21, %s28
      %p30 = scmp.eq.s32.totalorder %s29, 0
      %s32 = sadd.s32 %s31, 1
      %s33 = scalar_select %p30, %s31, %s32
      %p36 = pneg %p30
      %p37 = scmp.eq.s32.totalorder %s21, 3
      %p38 = por %p36, %p37
      %p39 = scmp.ne.s32.totalorder %s31, %s34
      %p40 = scmp.eq.s32.totalorder %s21, 0
      %p41 = por %p39, %p40
      %p42 = scmp.ne.s32.totalorder %s31, %s34
      %p43 = scmp.eq.s32.totalorder %s26, 3
      %p44 = por %p42, %p43
      %p45 = scmp.ne.s32.totalorder %s34, %s35
      %p46 = scmp.eq.s32.totalorder %s26, 0
      %p47 = por %p45, %p46
      %p48 = scmp.ne.s32.totalorder %s34, %s35
      %p49 = scmp.eq.s32.totalorder %s27, 3
      %p50 = por %p48, %p49
      %p52 = scmp.ne.s32.totalorder %s35, %s51
      %p53 = scmp.eq.s32.totalorder %s27, 0
      %p54 = por %p52, %p53
      %s56 = sadd.s32 %s55, 1
      %p59 = scmp.eq.s32.totalorder %s21, 3
      %p60 = scmp.ne.s32.totalorder %s55, %s57
      %p61 = scmp.eq.s32.totalorder %s21, 0
      %p62 = por %p60, %p61
      %p63 = scmp.ne.s32.totalorder %s55, %s57
      %p64 = scmp.eq.s32.totalorder %s26, 3
      %p65 = por %p63, %p64
      %p66 = scmp.ne.s32.totalorder %s57, %s58
      %p67 = scmp.eq.s32.totalorder %s26, 0
      %p68 = por %p66, %p67
      %p69 = scmp.ne.s32.totalorder %s57, %s58
      %p70 = scmp.eq.s32.totalorder %s27, 3
      %p71 = por %p69, %p70
      %p73 = scmp.ne.s32.totalorder %s58, %s72
      %p74 = scmp.eq.s32.totalorder %s27, 0
      %p75 = por %p73, %p74
      %s77 = sadd.s32 %s76, 1
      %p80 = scmp.eq.s32.totalorder %s21, 3
      %p81 = scmp.ne.s32.totalorder %s76, %s78
      %p82 = scmp.eq.s32.totalorder %s21, 0
      %p83 = por %p81, %p82
      %p84 = scmp.ne.s32.totalorder %s76, %s78
      %p85 = scmp.eq.s32.totalorder %s26, 3
      %p86 = por %p84, %p85
      %p87 = scmp.ne.s32.totalorder %s78, %s79
      %p88 = scmp.eq.s32.totalorder %s26, 0
      %p89 = por %p87, %p88
      %p90 = scmp.ne.s32.totalorder %s78, %s79
      %p91 = scmp.eq.s32.totalorder %s27, 3
      %p92 = por %p90, %p91
      %p94 = scmp.ne.s32.totalorder %s79, %s93
      %p95 = scmp.eq.s32.totalorder %s27, 0
      %p96 = por %p94, %p95
      %s98 = sadd.s32 %s97, 1
      %p101 = scmp.eq.s32.totalorder %s21, 3
      %p102 = scmp.ne.s32.totalorder %s97, %s99
      %p103 = scmp.eq.s32.totalorder %s21, 0
      %p104 = por %p102, %p103
      %p105 = scmp.ne.s32.totalorder %s97, %s99
      %p106 = scmp.eq.s32.totalorder %s26, 3
      %p107 = por %p105, %p106
      %p108 = scmp.ne.s32.totalorder %s99, %s100
      %p109 = scmp.eq.s32.totalorder %s26, 0
      %p110 = por %p108, %p109
      %p111 = scmp.ne.s32.totalorder %s99, %s100
      %p112 = scmp.eq.s32.totalorder %s27, 3
      %p113 = por %p111, %p112
      %p115 = scmp.ne.s32.totalorder %s100, %s114
      %p116 = scmp.eq.s32.totalorder %s27, 0
      %p117 = por %p115, %p116
      %s119 = sadd.s32 %s118, 1
      %p122 = scmp.eq.s32.totalorder %s21, 3
      %p123 = scmp.ne.s32.totalorder %s118, %s120
      %p124 = scmp.eq.s32.totalorder %s21, 0
      %p125 = por %p123, %p124
      %p126 = scmp.ne.s32.totalorder %s118, %s120
      %p127 = scmp.eq.s32.totalorder %s26, 3
      %p128 = por %p126, %p127
      %p129 = scmp.ne.s32.totalorder %s120, %s121
      %p130 = scmp.eq.s32.totalorder %s26, 0
      %p131 = por %p129, %p130
      %p132 = scmp.ne.s32.totalorder %s120, %s121
      %p133 = scmp.eq.s32.totalorder %s27, 3
      %p134 = por %p132, %p133
      %p136 = scmp.ne.s32.totalorder %s121, %s135
      %p137 = scmp.eq.s32.totalorder %s27, 0
      %p138 = por %p136, %p137
      %s139 = ssub.s32 %s21, %s28
      %p140 = scmp.eq.s32.totalorder %s139, 0
      %s142 = sadd.s32 %s141, 1
      %s143 = scalar_select %p140, %s141, %s142
      %p146 = pneg %p140
      %p147 = scmp.eq.s32.totalorder %s21, 3
      %p148 = por %p146, %p147
      %p149 = scmp.ne.s32.totalorder %s141, %s144
      %p150 = scmp.eq.s32.totalorder %s21, 0
      %p151 = por %p149, %p150
      %p152 = scmp.ne.s32.totalorder %s141, %s144
      %p153 = scmp.eq.s32.totalorder %s26, 3
      %p154 = por %p152, %p153
      %p155 = scmp.ne.s32.totalorder %s144, %s145
      %p156 = scmp.eq.s32.totalorder %s26, 0
      %p157 = por %p155, %p156
      %p158 = scmp.ne.s32.totalorder %s144, %s145
      %p159 = scmp.eq.s32.totalorder %s27, 3
      %p160 = por %p158, %p159
      %p162 = scmp.ne.s32.totalorder %s145, %s161
      %p163 = scmp.eq.s32.totalorder %s27, 0
      %p164 = por %p162, %p163
      %p165 = scmp.le.s32.totalorder 1, %s21
      %p166 = scmp.lt.s32.totalorder %s21, 5
      %p167 = pnand %p165, %p166
      %p168 = pneg %p167
      // Predicated region
      $region9: #{tpu_custom_call.1} parent=5 // pred_check
        _
      $region10: #{tpu_custom_call.1} parent=5 // pred_check_branch
        %170 = sbr.rel (%p167) target = $region12
      $region11: #{tpu_custom_call.1} parent=5 // pred_region
        %s171 = ssub.s32 %s21, 1
        // Predicated region
        $region13: #{tpu_custom_call.1} parent=11 // pred_check
          %p172 = pneg %p68
        $region14: #{tpu_custom_call.1} parent=11 // pred_check_branch
          %174 = sbr.rel (%p172) target = $region16
        $region15: #{tpu_custom_call.1} parent=11 // pred_region
          %s176 = ssub.s32 4096, 4096
          %177 = vsyncadd [#allocation8], %s176
          %s178 = sshll.u32 [#allocation7], 4
          %s179 = int_to_ptr.vmem [resolvable:$true] %s178
          %184 = dma.hbm_to_vmem [thread:$0]  %s2, 4096, %s179, [#allocation8], 128, 128, 8
        $region16: #{tpu_custom_call.1} parent=11 // pred_fallthru
          _
        // Predicated region
        $region17: #{tpu_custom_call.1} parent=11 // pred_check
          %p185 = pneg %p89
        $region18: #{tpu_custom_call.1} parent=11 // pred_check_branch
          %187 = sbr.rel (%p185) target = $region20
        $region19: #{tpu_custom_call.1} parent=11 // pred_region
          %s189 = ssub.s32 4096, 4096
          %190 = vsyncadd [#allocation8], %s189
          %s191 = sshll.u32 [#allocation9], 4
          %s192 = int_to_ptr.vmem [resolvable:$true] %s191
          %197 = dma.hbm_to_vmem [thread:$0]  %s3, 4096, %s192, [#allocation8], 128, 128, 8
        $region20: #{tpu_custom_call.1} parent=11 // pred_fallthru
          _
        // Predicated region
        $region21: #{tpu_custom_call.1} parent=11 // pred_check
          %p198 = pneg %p110
        $region22: #{tpu_custom_call.1} parent=11 // pred_check_branch
          %200 = sbr.rel (%p198) target = $region24
        $region23: #{tpu_custom_call.1} parent=11 // pred_region
          %s202 = ssub.s32 4096, 4096
          %203 = vsyncadd [#allocation11], %s202
          %s204 = sshll.u32 [#allocation10], 4
          %s205 = int_to_ptr.vmem [resolvable:$true] %s204
          %210 = dma.hbm_to_vmem [thread:$0]  %s4, 4096, %s205, [#allocation11], 128, 128, 8
        $region24: #{tpu_custom_call.1} parent=11 // pred_fallthru
          _
        // Predicated region
        $region25: #{tpu_custom_call.1} parent=11 // pred_check
          %p211 = pneg %p131
        $region26: #{tpu_custom_call.1} parent=11 // pred_check_branch
          %213 = sbr.rel (%p211) target = $region28
        $region27: #{tpu_custom_call.1} parent=11 // pred_region
          %s215 = ssub.s32 4096, 4096
          %216 = vsyncadd [#allocation11], %s215
          %s217 = sshll.u32 [#allocation12], 4
          %s218 = int_to_ptr.vmem [resolvable:$true] %s217
          %223 = dma.hbm_to_vmem [thread:$0]  %s5, 4096, %s218, [#allocation11], 128, 128, 8
        $region28: #{tpu_custom_call.1} parent=11 // pred_fallthru
          _
      $region12: #{tpu_custom_call.1} parent=5 // pred_fallthru
        _
      %p224 = scmp.lt.s32.totalorder %s21, 4
      // Predicated region
      $region29: #{tpu_custom_call.1} parent=5 // pred_check
        %p225 = pneg %p224
      $region30: #{tpu_custom_call.1} parent=5 // pred_check_branch
        %227 = sbr.rel (%p225) target = $region32
      $region31: #{tpu_custom_call.1} parent=5 // pred_region
        // Predicated region
        $region33: #{tpu_custom_call.1} parent=31 // pred_check
          %p228 = pneg %p41
        $region34: #{tpu_custom_call.1} parent=31 // pred_check_branch
          %230 = sbr.rel (%p228) target = $region36
        $region35: #{tpu_custom_call.1} parent=31 // pred_region
          %s231 = sand.u32 %s31, 1
          %s232 = scalar_lea.sflag [#allocation5], %s231
          %s233 = sand.u32 %s31, 1
          %s234 = smul.addr %s233, 256
          %s235 = scalar_lea.vmem [#allocation4], %s234
          %s236 = smul.u32 32, %s21
          %s238 = ssub.s32 4096, 4096
          %239 = vsyncadd %s232, %s238
          %s240 = smul.addr %s236, 2
          %s241 = smul.addr %s240, 64
          %s242 = scalar_lea.hbm %s1, %s241
          %s243 = sshll.u32 %s235, 4
          %s244 = int_to_ptr.vmem [resolvable:$true] %s243
          %249 = dma.hbm_to_vmem [thread:$0]  %s242, 4096, %s244, %s232, 128, 128, 8
        $region36: #{tpu_custom_call.1} parent=31 // pred_fallthru
          _
      $region32: #{tpu_custom_call.1} parent=5 // pred_fallthru
        _
      %p250 = scmp.le.s32.totalorder 1, %s21
      %p251 = scmp.lt.s32.totalorder %s21, 5
      %p252 = pnand %p250, %p251
      %p253 = pneg %p252
      // Predicated region
      $region37: #{tpu_custom_call.1} parent=5 // pred_check
        _
      $region38: #{tpu_custom_call.1} parent=5 // pred_check_branch
        %255 = sbr.rel (%p252) target = $region40
      $region39: #{tpu_custom_call.1} parent=5 // pred_region
        %s256 = ssub.s32 %s21, 1
        %s257 = sand.u32 %s34, 1
        %s258 = scalar_lea.sflag [#allocation5], %s257
        %s259 = sand.u32 %s34, 1
        %s260 = smul.addr %s259, 256
        %s261 = scalar_lea.vmem [#allocation4], %s260
        // Predicated region
        $region41: #{tpu_custom_call.1} parent=39 // pred_check
          %p262 = pneg %p47
        $region42: #{tpu_custom_call.1} parent=39 // pred_check_branch
          %264 = sbr.rel (%p262) target = $region44
        $region43: #{tpu_custom_call.1} parent=39 // pred_region
          %265 = dma.done %s258, 4096
        $region44: #{tpu_custom_call.1} parent=39 // pred_fallthru
          _
        // Predicated region
        $region45: #{tpu_custom_call.1} parent=39 // pred_check
          %p266 = pneg %p68
        $region46: #{tpu_custom_call.1} parent=39 // pred_check_branch
          %268 = sbr.rel (%p266) target = $region48
        $region47: #{tpu_custom_call.1} parent=39 // pred_region
          %269 = dma.done [#allocation8], 4096
        $region48: #{tpu_custom_call.1} parent=39 // pred_fallthru
          _
        // Predicated region
        $region49: #{tpu_custom_call.1} parent=39 // pred_check
          %p270 = pneg %p89
        $region50: #{tpu_custom_call.1} parent=39 // pred_check_branch
          %272 = sbr.rel (%p270) target = $region52
        $region51: #{tpu_custom_call.1} parent=39 // pred_region
          %273 = dma.done [#allocation8], 4096
        $region52: #{tpu_custom_call.1} parent=39 // pred_fallthru
          _
        // Predicated region
        $region53: #{tpu_custom_call.1} parent=39 // pred_check
          %p274 = pneg %p110
        $region54: #{tpu_custom_call.1} parent=39 // pred_check_branch
          %276 = sbr.rel (%p274) target = $region56
        $region55: #{tpu_custom_call.1} parent=39 // pred_region
          %277 = dma.done [#allocation11], 4096
        $region56: #{tpu_custom_call.1} parent=39 // pred_fallthru
          _
        // Predicated region
        $region57: #{tpu_custom_call.1} parent=39 // pred_check
          %p278 = pneg %p131
        $region58: #{tpu_custom_call.1} parent=39 // pred_check_branch
          %280 = sbr.rel (%p278) target = $region60
        $region59: #{tpu_custom_call.1} parent=39 // pred_region
          %281 = dma.done [#allocation11], 4096
        $region60: #{tpu_custom_call.1} parent=39 // pred_fallthru
          _
        %s282 = sand.u32 %s34, 1
        %s283 = scalar_lea.sflag [#allocation5], %s282
        %s284 = sand.u32 %s34, 1
        %s285 = smul.addr %s284, 256
        %s286 = scalar_lea.vmem [#allocation4], %s285
        %p287 = pneg %p47
        %p288 = pneg %p44
        %p289 = pneg %p68
        %p290 = pneg %p65
        %p291 = pneg %p89
        %p292 = pneg %p86
        %p293 = pneg %p110
        %p294 = pneg %p107
        %p295 = pneg %p131
        %p296 = pneg %p128
        %p297 = pneg %p157
        %p298 = pneg %p154
        %s299 = sand.u32 %s144, 1
        %s300 = scalar_lea.sflag [#allocation6], %s299
        %s301 = sand.u32 %s144, 1
        %s302 = smul.addr %s301, 512
        %s303 = scalar_lea.vmem [#allocation13], %s302
        %s304 = smul.u32 32, %s26
        %s305 = smul.u32 32, %s26
        %v306 = vld [vmem:[%s261] sm:$0xff]
        %v307 = vld [vmem:[%s261 + $0x8] sm:$0xff]
        %v308 = vld [vmem:[%s261 + $0x10] sm:$0xff]
        %v309 = vld [vmem:[%s261 + $0x18] sm:$0xff]
        %v310 = vld [vmem:[%s261 + $0x20] sm:$0xff]
        %v311 = vld [vmem:[%s261 + $0x28] sm:$0xff]
        %v312 = vld [vmem:[%s261 + $0x30] sm:$0xff]
        %v313 = vld [vmem:[%s261 + $0x38] sm:$0xff]
        %v314 = vld [vmem:[%s261 + $0x40] sm:$0xff]
        %v315 = vld [vmem:[%s261 + $0x48] sm:$0xff]
        %v316 = vld [vmem:[%s261 + $0x50] sm:$0xff]
        %v317 = vld [vmem:[%s261 + $0x58] sm:$0xff]
        %v318 = vld [vmem:[%s261 + $0x60] sm:$0xff]
        %v319 = vld [vmem:[%s261 + $0x68] sm:$0xff]
        %v320 = vld [vmem:[%s261 + $0x70] sm:$0xff]
        %v321 = vld [vmem:[%s261 + $0x78] sm:$0xff]
        %v322 = vld [vmem:[%s261 + $0x80] sm:$0xff]
        %v323 = vld [vmem:[%s261 + $0x88] sm:$0xff]
        %v324 = vld [vmem:[%s261 + $0x90] sm:$0xff]
        %v325 = vld [vmem:[%s261 + $0x98] sm:$0xff]
        %v326 = vld [vmem:[%s261 + $0xa0] sm:$0xff]
        %v327 = vld [vmem:[%s261 + $0xa8] sm:$0xff]
        %v328 = vld [vmem:[%s261 + $0xb0] sm:$0xff]
        %v329 = vld [vmem:[%s261 + $0xb8] sm:$0xff]
        %v330 = vld [vmem:[%s261 + $0xc0] sm:$0xff]
        %v331 = vld [vmem:[%s261 + $0xc8] sm:$0xff]
        %v332 = vld [vmem:[%s261 + $0xd0] sm:$0xff]
        %v333 = vld [vmem:[%s261 + $0xd8] sm:$0xff]
        %v334 = vld [vmem:[%s261 + $0xe0] sm:$0xff]
        %v335 = vld [vmem:[%s261 + $0xe8] sm:$0xff]
        %v336 = vld [vmem:[%s261 + $0xf0] sm:$0xff]
        %v337 = vld [vmem:[%s261 + $0xf8] sm:$0xff]
        %v338 = vld [vmem:[#allocation10] sm:$0xff]
        %v339 = vld [vmem:[#allocation10 + $0x8] sm:$0xff]
        %v340 = vld [vmem:[#allocation10 + $0x10] sm:$0xff]
        %v341 = vld [vmem:[#allocation10 + $0x18] sm:$0xff]
        %v342 = vld [vmem:[#allocation10 + $0x20] sm:$0xff]
        %v343 = vld [vmem:[#allocation10 + $0x28] sm:$0xff]
        %v344 = vld [vmem:[#allocation10 + $0x30] sm:$0xff]
        %v345 = vld [vmem:[#allocation10 + $0x38] sm:$0xff]
        %v346 = vld [vmem:[#allocation10 + $0x40] sm:$0xff]
        %v347 = vld [vmem:[#allocation10 + $0x48] sm:$0xff]
        %v348 = vld [vmem:[#allocation10 + $0x50] sm:$0xff]
        %v349 = vld [vmem:[#allocation10 + $0x58] sm:$0xff]
        %v350 = vld [vmem:[#allocation10 + $0x60] sm:$0xff]
        %v351 = vld [vmem:[#allocation10 + $0x68] sm:$0xff]
        %v352 = vld [vmem:[#allocation10 + $0x70] sm:$0xff]
        %v353 = vld [vmem:[#allocation10 + $0x78] sm:$0xff]
        %v354 = vld [vmem:[#allocation10 + $0x80] sm:$0xff]
        %v355 = vld [vmem:[#allocation10 + $0x88] sm:$0xff]
        %v356 = vld [vmem:[#allocation10 + $0x90] sm:$0xff]
        %v357 = vld [vmem:[#allocation10 + $0x98] sm:$0xff]
        %v358 = vld [vmem:[#allocation10 + $0xa0] sm:$0xff]
        %v359 = vld [vmem:[#allocation10 + $0xa8] sm:$0xff]
        %v360 = vld [vmem:[#allocation10 + $0xb0] sm:$0xff]
        %v361 = vld [vmem:[#allocation10 + $0xb8] sm:$0xff]
        %v362 = vld [vmem:[#allocation10 + $0xc0] sm:$0xff]
        %v363 = vld [vmem:[#allocation10 + $0xc8] sm:$0xff]
        %v364 = vld [vmem:[#allocation10 + $0xd0] sm:$0xff]
        %v365 = vld [vmem:[#allocation10 + $0xd8] sm:$0xff]
        %v366 = vld [vmem:[#allocation10 + $0xe0] sm:$0xff]
        %v367 = vld [vmem:[#allocation10 + $0xe8] sm:$0xff]
        %v368 = vld [vmem:[#allocation10 + $0xf0] sm:$0xff]
        %v369 = vld [vmem:[#allocation10 + $0xf8] sm:$0xff]
        %v370 = vld [vmem:[#allocation12] sm:$0xff]
        %v371 = vld [vmem:[#allocation12 + $0x8] sm:$0xff]
        %v372 = vld [vmem:[#allocation12 + $0x10] sm:$0xff]
        %v373 = vld [vmem:[#allocation12 + $0x18] sm:$0xff]
        %v374 = vld [vmem:[#allocation12 + $0x20] sm:$0xff]
        %v375 = vld [vmem:[#allocation12 + $0x28] sm:$0xff]
        %v376 = vld [vmem:[#allocation12 + $0x30] sm:$0xff]
        %v377 = vld [vmem:[#allocation12 + $0x38] sm:$0xff]
        %v378 = vld [vmem:[#allocation12 + $0x40] sm:$0xff]
        %v379 = vld [vmem:[#allocation12 + $0x48] sm:$0xff]
        %v380 = vld [vmem:[#allocation12 + $0x50] sm:$0xff]
        %v381 = vld [vmem:[#allocation12 + $0x58] sm:$0xff]
        %v382 = vld [vmem:[#allocation12 + $0x60] sm:$0xff]
        %v383 = vld [vmem:[#allocation12 + $0x68] sm:$0xff]
        %v384 = vld [vmem:[#allocation12 + $0x70] sm:$0xff]
        %v385 = vld [vmem:[#allocation12 + $0x78] sm:$0xff]
        %v386 = vld [vmem:[#allocation12 + $0x80] sm:$0xff]
        %v387 = vld [vmem:[#allocation12 + $0x88] sm:$0xff]
        %v388 = vld [vmem:[#allocation12 + $0x90] sm:$0xff]
        %v389 = vld [vmem:[#allocation12 + $0x98] sm:$0xff]
        %v390 = vld [vmem:[#allocation12 + $0xa0] sm:$0xff]
        %v391 = vld [vmem:[#allocation12 + $0xa8] sm:$0xff]
        %v392 = vld [vmem:[#allocation12 + $0xb0] sm:$0xff]
        %v393 = vld [vmem:[#allocation12 + $0xb8] sm:$0xff]
        %v394 = vld [vmem:[#allocation12 + $0xc0] sm:$0xff]
        %v395 = vld [vmem:[#allocation12 + $0xc8] sm:$0xff]
        %v396 = vld [vmem:[#allocation12 + $0xd0] sm:$0xff]
        %v397 = vld [vmem:[#allocation12 + $0xd8] sm:$0xff]
        %v398 = vld [vmem:[#allocation12 + $0xe0] sm:$0xff]
        %v399 = vld [vmem:[#allocation12 + $0xe8] sm:$0xff]
        %v400 = vld [vmem:[#allocation12 + $0xf0] sm:$0xff]
        %v401 = vld [vmem:[#allocation12 + $0xf8] sm:$0xff]
        %v402 = vadd.bf16 %v338, %v370
        %v403 = vadd.bf16 %v339, %v371
        %v404 = vadd.bf16 %v340, %v372
        %v405 = vadd.bf16 %v341, %v373
        %v406 = vadd.bf16 %v342, %v374
        %v407 = vadd.bf16 %v343, %v375
        %v408 = vadd.bf16 %v344, %v376
        %v409 = vadd.bf16 %v345, %v377
        %v410 = vadd.bf16 %v346, %v378
        %v411 = vadd.bf16 %v347, %v379
        %v412 = vadd.bf16 %v348, %v380
        %v413 = vadd.bf16 %v349, %v381
        %v414 = vadd.bf16 %v350, %v382
        %v415 = vadd.bf16 %v351, %v383
        %v416 = vadd.bf16 %v352, %v384
        %v417 = vadd.bf16 %v353, %v385
        %v418 = vadd.bf16 %v354, %v386
        %v419 = vadd.bf16 %v355, %v387
        %v420 = vadd.bf16 %v356, %v388
        %v421 = vadd.bf16 %v357, %v389
        %v422 = vadd.bf16 %v358, %v390
        %v423 = vadd.bf16 %v359, %v391
        %v424 = vadd.bf16 %v360, %v392
        %v425 = vadd.bf16 %v361, %v393
        %v426 = vadd.bf16 %v362, %v394
        %v427 = vadd.bf16 %v363, %v395
        %v428 = vadd.bf16 %v364, %v396
        %v429 = vadd.bf16 %v365, %v397
        %v430 = vadd.bf16 %v366, %v398
        %v431 = vadd.bf16 %v367, %v399
        %v432 = vadd.bf16 %v368, %v400
        %v433 = vadd.bf16 %v369, %v401
        %v466 = vunpack.c.l.b16 %v306
        %v467 = vunpack.c.h.b16 %v306
        %v468 = vunpack.c.l.b16 %v307
        %v469 = vunpack.c.h.b16 %v307
        %v470 = vunpack.c.l.b16 %v308
        %v471 = vunpack.c.h.b16 %v308
        %v472 = vunpack.c.l.b16 %v309
        %v473 = vunpack.c.h.b16 %v309
        %v474 = vunpack.c.l.b16 %v310
        %v475 = vunpack.c.h.b16 %v310
        %v476 = vunpack.c.l.b16 %v311
        %v477 = vunpack.c.h.b16 %v311
        %v478 = vunpack.c.l.b16 %v312
        %v479 = vunpack.c.h.b16 %v312
        %v480 = vunpack.c.l.b16 %v313
        %v481 = vunpack.c.h.b16 %v313
        %v482 = vunpack.c.l.b16 %v314
        %v483 = vunpack.c.h.b16 %v314
        %v484 = vunpack.c.l.b16 %v315
        %v485 = vunpack.c.h.b16 %v315
        %v486 = vunpack.c.l.b16 %v316
        %v487 = vunpack.c.h.b16 %v316
        %v488 = vunpack.c.l.b16 %v317
        %v489 = vunpack.c.h.b16 %v317
        %v490 = vunpack.c.l.b16 %v318
        %v491 = vunpack.c.h.b16 %v318
        %v492 = vunpack.c.l.b16 %v319
        %v493 = vunpack.c.h.b16 %v319
        %v494 = vunpack.c.l.b16 %v320
        %v495 = vunpack.c.h.b16 %v320
        %v496 = vunpack.c.l.b16 %v321
        %v497 = vunpack.c.h.b16 %v321
        %v498 = vunpack.c.l.b16 %v322
        %v499 = vunpack.c.h.b16 %v322
        %v500 = vunpack.c.l.b16 %v323
        %v501 = vunpack.c.h.b16 %v323
        %v502 = vunpack.c.l.b16 %v324
        %v503 = vunpack.c.h.b16 %v324
        %v504 = vunpack.c.l.b16 %v325
        %v505 = vunpack.c.h.b16 %v325
        %v506 = vunpack.c.l.b16 %v326
        %v507 = vunpack.c.h.b16 %v326
        %v508 = vunpack.c.l.b16 %v327
        %v509 = vunpack.c.h.b16 %v327
        %v510 = vunpack.c.l.b16 %v328
        %v511 = vunpack.c.h.b16 %v328
        %v512 = vunpack.c.l.b16 %v329
        %v513 = vunpack.c.h.b16 %v329
        %v514 = vunpack.c.l.b16 %v330
        %v515 = vunpack.c.h.b16 %v330
        %v516 = vunpack.c.l.b16 %v331
        %v517 = vunpack.c.h.b16 %v331
        %v518 = vunpack.c.l.b16 %v332
        %v519 = vunpack.c.h.b16 %v332
        %v520 = vunpack.c.l.b16 %v333
        %v521 = vunpack.c.h.b16 %v333
        %v522 = vunpack.c.l.b16 %v334
        %v523 = vunpack.c.h.b16 %v334
        %v524 = vunpack.c.l.b16 %v335
        %v525 = vunpack.c.h.b16 %v335
        %v526 = vunpack.c.l.b16 %v336
        %v527 = vunpack.c.h.b16 %v336
        %v528 = vunpack.c.l.b16 %v337
        %v529 = vunpack.c.h.b16 %v337
        %v530 = vpack.c.b16 %v468, %v466
        %v531 = vpack.c.b16 %v469, %v467
        %v532 = vpack.c.b16 %v472, %v470
        %v533 = vpack.c.b16 %v473, %v471
        %v534 = vpack.c.b16 %v476, %v474
        %v535 = vpack.c.b16 %v477, %v475
        %v536 = vpack.c.b16 %v480, %v478
        %v537 = vpack.c.b16 %v481, %v479
        %v538 = vpack.c.b16 %v484, %v482
        %v539 = vpack.c.b16 %v485, %v483
        %v540 = vpack.c.b16 %v488, %v486
        %v541 = vpack.c.b16 %v489, %v487
        %v542 = vpack.c.b16 %v492, %v490
        %v543 = vpack.c.b16 %v493, %v491
        %v544 = vpack.c.b16 %v496, %v494
        %v545 = vpack.c.b16 %v497, %v495
        %v546 = vpack.c.b16 %v500, %v498
        %v547 = vpack.c.b16 %v501, %v499
        %v548 = vpack.c.b16 %v504, %v502
        %v549 = vpack.c.b16 %v505, %v503
        %v550 = vpack.c.b16 %v508, %v506
        %v551 = vpack.c.b16 %v509, %v507
        %v552 = vpack.c.b16 %v512, %v510
        %v553 = vpack.c.b16 %v513, %v511
        %v554 = vpack.c.b16 %v516, %v514
        %v555 = vpack.c.b16 %v517, %v515
        %v556 = vpack.c.b16 %v520, %v518
        %v557 = vpack.c.b16 %v521, %v519
        %v558 = vpack.c.b16 %v524, %v522
        %v559 = vpack.c.b16 %v525, %v523
        %v560 = vpack.c.b16 %v528, %v526
        %v561 = vpack.c.b16 %v529, %v527
        %v626 = vunpack.c.l.b16 %v402
        %v627 = vunpack.c.h.b16 %v402
        %v628 = vunpack.c.l.b16 %v403
        %v629 = vunpack.c.h.b16 %v403
        %v630 = vunpack.c.l.b16 %v404
        %v631 = vunpack.c.h.b16 %v404
        %v632 = vunpack.c.l.b16 %v405
        %v633 = vunpack.c.h.b16 %v405
        %v634 = vunpack.c.l.b16 %v406
        %v635 = vunpack.c.h.b16 %v406
        %v636 = vunpack.c.l.b16 %v407
        %v637 = vunpack.c.h.b16 %v407
        %v638 = vunpack.c.l.b16 %v408
        %v639 = vunpack.c.h.b16 %v408
        %v640 = vunpack.c.l.b16 %v409
        %v641 = vunpack.c.h.b16 %v409
        %v642 = vunpack.c.l.b16 %v410
        %v643 = vunpack.c.h.b16 %v410
        %v644 = vunpack.c.l.b16 %v411
        %v645 = vunpack.c.h.b16 %v411
        %v646 = vunpack.c.l.b16 %v412
        %v647 = vunpack.c.h.b16 %v412
        %v648 = vunpack.c.l.b16 %v413
        %v649 = vunpack.c.h.b16 %v413
        %v650 = vunpack.c.l.b16 %v414
        %v651 = vunpack.c.h.b16 %v414
        %v652 = vunpack.c.l.b16 %v415
        %v653 = vunpack.c.h.b16 %v415
        %v654 = vunpack.c.l.b16 %v416
        %v655 = vunpack.c.h.b16 %v416
        %v656 = vunpack.c.l.b16 %v417
        %v657 = vunpack.c.h.b16 %v417
        %v658 = vunpack.c.l.b16 %v418
        %v659 = vunpack.c.h.b16 %v418
        %v660 = vunpack.c.l.b16 %v419
        %v661 = vunpack.c.h.b16 %v419
        %v662 = vunpack.c.l.b16 %v420
        %v663 = vunpack.c.h.b16 %v420
        %v664 = vunpack.c.l.b16 %v421
        %v665 = vunpack.c.h.b16 %v421
        %v666 = vunpack.c.l.b16 %v422
        %v667 = vunpack.c.h.b16 %v422
        %v668 = vunpack.c.l.b16 %v423
        %v669 = vunpack.c.h.b16 %v423
        %v670 = vunpack.c.l.b16 %v424
        %v671 = vunpack.c.h.b16 %v424
        %v672 = vunpack.c.l.b16 %v425
        %v673 = vunpack.c.h.b16 %v425
        %v674 = vunpack.c.l.b16 %v426
        %v675 = vunpack.c.h.b16 %v426
        %v676 = vunpack.c.l.b16 %v427
        %v677 = vunpack.c.h.b16 %v427
        %v678 = vunpack.c.l.b16 %v428
        %v679 = vunpack.c.h.b16 %v428
        %v680 = vunpack.c.l.b16 %v429
        %v681 = vunpack.c.h.b16 %v429
        %v682 = vunpack.c.l.b16 %v430
        %v683 = vunpack.c.h.b16 %v430
        %v684 = vunpack.c.l.b16 %v431
        %v685 = vunpack.c.h.b16 %v431
        %v686 = vunpack.c.l.b16 %v432
        %v687 = vunpack.c.h.b16 %v432
        %v688 = vunpack.c.l.b16 %v433
        %v689 = vunpack.c.h.b16 %v433
        %v690 = vpack.c.b16 %v628, %v626
        %v691 = vpack.c.b16 %v629, %v627
        %v692 = vpack.c.b16 %v632, %v630
        %v693 = vpack.c.b16 %v633, %v631
        %v694 = vpack.c.b16 %v636, %v634
        %v695 = vpack.c.b16 %v637, %v635
        %v696 = vpack.c.b16 %v640, %v638
        %v697 = vpack.c.b16 %v641, %v639
        %v698 = vpack.c.b16 %v644, %v642
        %v699 = vpack.c.b16 %v645, %v643
        %v700 = vpack.c.b16 %v648, %v646
        %v701 = vpack.c.b16 %v649, %v647
        %v702 = vpack.c.b16 %v652, %v650
        %v703 = vpack.c.b16 %v653, %v651
        %v704 = vpack.c.b16 %v656, %v654
        %v705 = vpack.c.b16 %v657, %v655
        %v706 = vpack.c.b16 %v660, %v658
        %v707 = vpack.c.b16 %v661, %v659
        %v708 = vpack.c.b16 %v664, %v662
        %v709 = vpack.c.b16 %v665, %v663
        %v710 = vpack.c.b16 %v668, %v666
        %v711 = vpack.c.b16 %v669, %v667
        %v712 = vpack.c.b16 %v672, %v670
        %v713 = vpack.c.b16 %v673, %v671
        %v714 = vpack.c.b16 %v676, %v674
        %v715 = vpack.c.b16 %v677, %v675
        %v716 = vpack.c.b16 %v680, %v678
        %v717 = vpack.c.b16 %v681, %v679
        %v718 = vpack.c.b16 %v684, %v682
        %v719 = vpack.c.b16 %v685, %v683
        %v720 = vpack.c.b16 %v688, %v686
        %v721 = vpack.c.b16 %v689, %v687
        %754 = vmatprep.subr.bf16.mxu0 %v705
        %755 = vmatpush1.bf16.msra.mxu0 %v704
        %756 = vmatprep.subr.bf16.mxu0 %v703
        %757 = vmatpush1.bf16.msra.mxu0 %v702
        %758 = vmatprep.subr.bf16.mxu0 %v701
        %759 = vmatpush1.bf16.msra.mxu0 %v700
        %760 = vmatprep.subr.bf16.mxu0 %v699
        %761 = vmatpush1.bf16.msra.mxu0 %v698
        %762 = vmatprep.subr.bf16.mxu0 %v697
        %763 = vmatpush1.bf16.msra.mxu0 %v696
        %764 = vmatprep.subr.bf16.mxu0 %v695
        %765 = vmatpush1.bf16.msra.mxu0 %v694
        %766 = vmatprep.subr.bf16.mxu0 %v693
        %767 = vmatpush1.bf16.msra.mxu0 %v692
        %768 = vmatprep.subr.bf16.mxu0 %v691
        %769 = vmatpush1.bf16.msra.mxu0 %v690
        %770 = vmatprep.subr.bf16.mxu0 %v721
        %771 = vmatpush2.bf16.msra.mxu0 %v720
        %772 = vmatprep.subr.bf16.mxu0 %v719
        %773 = vmatpush2.bf16.msra.mxu0 %v718
        %774 = vmatprep.subr.bf16.mxu0 %v717
        %775 = vmatpush2.bf16.msra.mxu0 %v716
        %776 = vmatprep.subr.bf16.mxu0 %v715
        %777 = vmatpush2.bf16.msra.mxu0 %v714
        %778 = vmatprep.subr.bf16.mxu0 %v713
        %779 = vmatpush2.bf16.msra.mxu0 %v712
        %780 = vmatprep.subr.bf16.mxu0 %v711
        %781 = vmatpush2.bf16.msra.mxu0 %v710
        %782 = vmatprep.subr.bf16.mxu0 %v709
        %783 = vmatpush2.bf16.msra.mxu0 %v708
        %784 = vmatprep.subr.bf16.mxu0 %v707
        %785 = vmatpush2.bf16.msra.mxu0 %v706
        %786 = vmatprep.mubr.bf16.mxu0 %v531
        %787 = vmatmul.mubr.bf16.gmra.mxu0 %v530
        %v788 = vpop.f32.mrf.mxu0
        %v789 = vadd.f32 0.0, %v788
        %v790 = vpop.f32.mrf.mxu0
        %v791 = vadd.f32 0.0, %v790
        %v792 = vpop.f32.mrf.mxu0
        %v793 = vadd.f32 0.0, %v792
        %v794 = vpop.f32.mrf.mxu0
        %v795 = vadd.f32 0.0, %v794
        %796 = vmatprep.mubr.bf16.mxu0 %v533
        %797 = vmatmul.mubr.bf16.gmra.mxu0 %v532
        %v798 = vpop.f32.mrf.mxu0
        %v799 = vadd.f32 0.0, %v798
        %v800 = vpop.f32.mrf.mxu0
        %v801 = vadd.f32 0.0, %v800
        %v802 = vpop.f32.mrf.mxu0
        %v803 = vadd.f32 0.0, %v802
        %v804 = vpop.f32.mrf.mxu0
        %v805 = vadd.f32 0.0, %v804
        %806 = vmatprep.mubr.bf16.mxu0 %v535
        %807 = vmatmul.mubr.bf16.gmra.mxu0 %v534
        %v808 = vpop.f32.mrf.mxu0
        %v809 = vadd.f32 0.0, %v808
        %v810 = vpop.f32.mrf.mxu0
        %v811 = vadd.f32 0.0, %v810
        %v812 = vpop.f32.mrf.mxu0
        %v813 = vadd.f32 0.0, %v812
        %v814 = vpop.f32.mrf.mxu0
        %v815 = vadd.f32 0.0, %v814
        %816 = vmatprep.mubr.bf16.mxu0 %v537
        %817 = vmatmul.mubr.bf16.gmra.mxu0 %v536
        %v818 = vpop.f32.mrf.mxu0
        %v819 = vadd.f32 0.0, %v818
        %v820 = vpop.f32.mrf.mxu0
        %v821 = vadd.f32 0.0, %v820
        %v822 = vpop.f32.mrf.mxu0
        %v823 = vadd.f32 0.0, %v822
        %v824 = vpop.f32.mrf.mxu0
        %v825 = vadd.f32 0.0, %v824
        %826 = vmatprep.mubr.bf16.mxu0 %v539
        %827 = vmatmul.mubr.bf16.gmra.mxu0 %v538
        %v828 = vpop.f32.mrf.mxu0
        %v829 = vadd.f32 0.0, %v828
        %v830 = vpop.f32.mrf.mxu0
        %v831 = vadd.f32 0.0, %v830
        %v832 = vpop.f32.mrf.mxu0
        %v833 = vadd.f32 0.0, %v832
        %v834 = vpop.f32.mrf.mxu0
        %v835 = vadd.f32 0.0, %v834
        %836 = vmatprep.mubr.bf16.mxu0 %v541
        %837 = vmatmul.mubr.bf16.gmra.mxu0 %v540
        %v838 = vpop.f32.mrf.mxu0
        %v839 = vadd.f32 0.0, %v838
        %v840 = vpop.f32.mrf.mxu0
        %v841 = vadd.f32 0.0, %v840
        %v842 = vpop.f32.mrf.mxu0
        %v843 = vadd.f32 0.0, %v842
        %v844 = vpop.f32.mrf.mxu0
        %v845 = vadd.f32 0.0, %v844
        %846 = vmatprep.mubr.bf16.mxu0 %v543
        %847 = vmatmul.mubr.bf16.gmra.mxu0 %v542
        %v848 = vpop.f32.mrf.mxu0
        %v849 = vadd.f32 0.0, %v848
        %v850 = vpop.f32.mrf.mxu0
        %v851 = vadd.f32 0.0, %v850
        %v852 = vpop.f32.mrf.mxu0
        %v853 = vadd.f32 0.0, %v852
        %v854 = vpop.f32.mrf.mxu0
        %v855 = vadd.f32 0.0, %v854
        %856 = vmatprep.mubr.bf16.mxu0 %v545
        %857 = vmatmul.mubr.bf16.gmra.mxu0 %v544
        %v858 = vpop.f32.mrf.mxu0
        %v859 = vadd.f32 0.0, %v858
        %v860 = vpop.f32.mrf.mxu0
        %v861 = vadd.f32 0.0, %v860
        %v862 = vpop.f32.mrf.mxu0
        %v863 = vadd.f32 0.0, %v862
        %v864 = vpop.f32.mrf.mxu0
        %v865 = vadd.f32 0.0, %v864
        %866 = vmatprep.mubr.bf16.mxu0 %v547
        %867 = vmatmul.mubr.bf16.gmra.mxu0 %v546
        %v868 = vpop.f32.mrf.mxu0
        %v869 = vadd.f32 0.0, %v868
        %v870 = vpop.f32.mrf.mxu0
        %v871 = vadd.f32 0.0, %v870
        %v872 = vpop.f32.mrf.mxu0
        %v873 = vadd.f32 0.0, %v872
        %v874 = vpop.f32.mrf.mxu0
        %v875 = vadd.f32 0.0, %v874
        %876 = vmatprep.mubr.bf16.mxu0 %v549
        %877 = vmatmul.mubr.bf16.gmra.mxu0 %v548
        %v878 = vpop.f32.mrf.mxu0
        %v879 = vadd.f32 0.0, %v878
        %v880 = vpop.f32.mrf.mxu0
        %v881 = vadd.f32 0.0, %v880
        %v882 = vpop.f32.mrf.mxu0
        %v883 = vadd.f32 0.0, %v882
        %v884 = vpop.f32.mrf.mxu0
        %v885 = vadd.f32 0.0, %v884
        %886 = vmatprep.mubr.bf16.mxu0 %v551
        %887 = vmatmul.mubr.bf16.gmra.mxu0 %v550
        %v888 = vpop.f32.mrf.mxu0
        %v889 = vadd.f32 0.0, %v888
        %v890 = vpop.f32.mrf.mxu0
        %v891 = vadd.f32 0.0, %v890
        %v892 = vpop.f32.mrf.mxu0
        %v893 = vadd.f32 0.0, %v892
        %v894 = vpop.f32.mrf.mxu0
        %v895 = vadd.f32 0.0, %v894
        %896 = vmatprep.mubr.bf16.mxu0 %v553
        %897 = vmatmul.mubr.bf16.gmra.mxu0 %v552
        %v898 = vpop.f32.mrf.mxu0
        %v899 = vadd.f32 0.0, %v898
        %v900 = vpop.f32.mrf.mxu0
        %v901 = vadd.f32 0.0, %v900
        %v902 = vpop.f32.mrf.mxu0
        %v903 = vadd.f32 0.0, %v902
        %v904 = vpop.f32.mrf.mxu0
        %v905 = vadd.f32 0.0, %v904
        %906 = vmatprep.mubr.bf16.mxu0 %v555
        %907 = vmatmul.mubr.bf16.gmra.mxu0 %v554
        %v908 = vpop.f32.mrf.mxu0
        %v909 = vadd.f32 0.0, %v908
        %v910 = vpop.f32.mrf.mxu0
        %v911 = vadd.f32 0.0, %v910
        %v912 = vpop.f32.mrf.mxu0
        %v913 = vadd.f32 0.0, %v912
        %v914 = vpop.f32.mrf.mxu0
        %v915 = vadd.f32 0.0, %v914
        %916 = vmatprep.mubr.bf16.mxu0 %v557
        %917 = vmatmul.mubr.bf16.gmra.mxu0 %v556
        %v918 = vpop.f32.mrf.mxu0
        %v919 = vadd.f32 0.0, %v918
        %v920 = vpop.f32.mrf.mxu0
        %v921 = vadd.f32 0.0, %v920
        %v922 = vpop.f32.mrf.mxu0
        %v923 = vadd.f32 0.0, %v922
        %v924 = vpop.f32.mrf.mxu0
        %v925 = vadd.f32 0.0, %v924
        %926 = vmatprep.mubr.bf16.mxu0 %v559
        %927 = vmatmul.mubr.bf16.gmra.mxu0 %v558
        %v928 = vpop.f32.mrf.mxu0
        %v929 = vadd.f32 0.0, %v928
        %v930 = vpop.f32.mrf.mxu0
        %v931 = vadd.f32 0.0, %v930
        %v932 = vpop.f32.mrf.mxu0
        %v933 = vadd.f32 0.0, %v932
        %v934 = vpop.f32.mrf.mxu0
        %v935 = vadd.f32 0.0, %v934
        %936 = vmatprep.mubr.bf16.mxu0 %v561
        %937 = vmatmul.mubr.bf16.gmra.mxu0 %v560
        %v938 = vpop.f32.mrf.mxu0
        %v939 = vadd.f32 0.0, %v938
        %v940 = vpop.f32.mrf.mxu0
        %v941 = vadd.f32 0.0, %v940
        %v942 = vpop.f32.mrf.mxu0
        %v943 = vadd.f32 0.0, %v942
        %v944 = vpop.f32.mrf.mxu0
        %v945 = vadd.f32 0.0, %v944
        %946 = vdwg.mxu0
        %s947 = sld [smem:[#allocation3]]
        %v948 = vstv %s947
        %v949 = vmul.f32 %v948, %v789
        %v950 = vmul.f32 %v948, %v791
        %v951 = vmul.f32 %v948, %v793
        %v952 = vmul.f32 %v948, %v795
        %v953 = vmul.f32 %v948, %v799
        %v954 = vmul.f32 %v948, %v801
        %v955 = vmul.f32 %v948, %v803
        %v956 = vmul.f32 %v948, %v805
        %v957 = vmul.f32 %v948, %v809
        %v958 = vmul.f32 %v948, %v811
        %v959 = vmul.f32 %v948, %v813
        %v960 = vmul.f32 %v948, %v815
        %v961 = vmul.f32 %v948, %v819
        %v962 = vmul.f32 %v948, %v821
        %v963 = vmul.f32 %v948, %v823
        %v964 = vmul.f32 %v948, %v825
        %v965 = vmul.f32 %v948, %v829
        %v966 = vmul.f32 %v948, %v831
        %v967 = vmul.f32 %v948, %v833
        %v968 = vmul.f32 %v948, %v835
        %v969 = vmul.f32 %v948, %v839
        %v970 = vmul.f32 %v948, %v841
        %v971 = vmul.f32 %v948, %v843
        %v972 = vmul.f32 %v948, %v845
        %v973 = vmul.f32 %v948, %v849
        %v974 = vmul.f32 %v948, %v851
        %v975 = vmul.f32 %v948, %v853
        %v976 = vmul.f32 %v948, %v855
        %v977 = vmul.f32 %v948, %v859
        %v978 = vmul.f32 %v948, %v861
        %v979 = vmul.f32 %v948, %v863
        %v980 = vmul.f32 %v948, %v865
        %v981 = vmul.f32 %v948, %v869
        %v982 = vmul.f32 %v948, %v871
        %v983 = vmul.f32 %v948, %v873
        %v984 = vmul.f32 %v948, %v875
        %v985 = vmul.f32 %v948, %v879
        %v986 = vmul.f32 %v948, %v881
        %v987 = vmul.f32 %v948, %v883
        %v988 = vmul.f32 %v948, %v885
        %v989 = vmul.f32 %v948, %v889
        %v990 = vmul.f32 %v948, %v891
        %v991 = vmul.f32 %v948, %v893
        %v992 = vmul.f32 %v948, %v895
        %v993 = vmul.f32 %v948, %v899
        %v994 = vmul.f32 %v948, %v901
        %v995 = vmul.f32 %v948, %v903
        %v996 = vmul.f32 %v948, %v905
        %v997 = vmul.f32 %v948, %v909
        %v998 = vmul.f32 %v948, %v911
        %v999 = vmul.f32 %v948, %v913
        %v1000 = vmul.f32 %v948, %v915
        %v1001 = vmul.f32 %v948, %v919
        %v1002 = vmul.f32 %v948, %v921
        %v1003 = vmul.f32 %v948, %v923
        %v1004 = vmul.f32 %v948, %v925
        %v1005 = vmul.f32 %v948, %v929
        %v1006 = vmul.f32 %v948, %v931
        %v1007 = vmul.f32 %v948, %v933
        %v1008 = vmul.f32 %v948, %v935
        %v1009 = vmul.f32 %v948, %v939
        %v1010 = vmul.f32 %v948, %v941
        %v1011 = vmul.f32 %v948, %v943
        %v1012 = vmul.f32 %v948, %v945
        %v1013 = vpack.c.bf16 %v951, %v949
        %v1014 = vpack.c.bf16 %v952, %v950
        %v1015 = vpack.c.bf16 %v955, %v953
        %v1016 = vpack.c.bf16 %v956, %v954
        %v1017 = vpack.c.bf16 %v959, %v957
        %v1018 = vpack.c.bf16 %v960, %v958
        %v1019 = vpack.c.bf16 %v963, %v961
        %v1020 = vpack.c.bf16 %v964, %v962
        %v1021 = vpack.c.bf16 %v967, %v965
        %v1022 = vpack.c.bf16 %v968, %v966
        %v1023 = vpack.c.bf16 %v971, %v969
        %v1024 = vpack.c.bf16 %v972, %v970
        %v1025 = vpack.c.bf16 %v975, %v973
        %v1026 = vpack.c.bf16 %v976, %v974
        %v1027 = vpack.c.bf16 %v979, %v977
        %v1028 = vpack.c.bf16 %v980, %v978
        %v1029 = vpack.c.bf16 %v983, %v981
        %v1030 = vpack.c.bf16 %v984, %v982
        %v1031 = vpack.c.bf16 %v987, %v985
        %v1032 = vpack.c.bf16 %v988, %v986
        %v1033 = vpack.c.bf16 %v991, %v989
        %v1034 = vpack.c.bf16 %v992, %v990
        %v1035 = vpack.c.bf16 %v995, %v993
        %v1036 = vpack.c.bf16 %v996, %v994
        %v1037 = vpack.c.bf16 %v999, %v997
        %v1038 = vpack.c.bf16 %v1000, %v998
        %v1039 = vpack.c.bf16 %v1003, %v1001
        %v1040 = vpack.c.bf16 %v1004, %v1002
        %v1041 = vpack.c.bf16 %v1007, %v1005
        %v1042 = vpack.c.bf16 %v1008, %v1006
        %v1043 = vpack.c.bf16 %v1011, %v1009
        %v1044 = vpack.c.bf16 %v1012, %v1010
        %v1045 = vld [vmem:[#allocation9] sm:$0xff]
        %v1046 = vld [vmem:[#allocation9 + $0x8] sm:$0xff]
        %v1047 = vld [vmem:[#allocation9 + $0x10] sm:$0xff]
        %v1048 = vld [vmem:[#allocation9 + $0x18] sm:$0xff]
        %v1049 = vld [vmem:[#allocation9 + $0x20] sm:$0xff]
        %v1050 = vld [vmem:[#allocation9 + $0x28] sm:$0xff]
        %v1051 = vld [vmem:[#allocation9 + $0x30] sm:$0xff]
        %v1052 = vld [vmem:[#allocation9 + $0x38] sm:$0xff]
        %v1053 = vld [vmem:[#allocation9 + $0x40] sm:$0xff]
        %v1054 = vld [vmem:[#allocation9 + $0x48] sm:$0xff]
        %v1055 = vld [vmem:[#allocation9 + $0x50] sm:$0xff]
        %v1056 = vld [vmem:[#allocation9 + $0x58] sm:$0xff]
        %v1057 = vld [vmem:[#allocation9 + $0x60] sm:$0xff]
        %v1058 = vld [vmem:[#allocation9 + $0x68] sm:$0xff]
        %v1059 = vld [vmem:[#allocation9 + $0x70] sm:$0xff]
        %v1060 = vld [vmem:[#allocation9 + $0x78] sm:$0xff]
        %v1061 = vld [vmem:[#allocation9 + $0x80] sm:$0xff]
        %v1062 = vld [vmem:[#allocation9 + $0x88] sm:$0xff]
        %v1063 = vld [vmem:[#allocation9 + $0x90] sm:$0xff]
        %v1064 = vld [vmem:[#allocation9 + $0x98] sm:$0xff]
        %v1065 = vld [vmem:[#allocation9 + $0xa0] sm:$0xff]
        %v1066 = vld [vmem:[#allocation9 + $0xa8] sm:$0xff]
        %v1067 = vld [vmem:[#allocation9 + $0xb0] sm:$0xff]
        %v1068 = vld [vmem:[#allocation9 + $0xb8] sm:$0xff]
        %v1069 = vld [vmem:[#allocation9 + $0xc0] sm:$0xff]
        %v1070 = vld [vmem:[#allocation9 + $0xc8] sm:$0xff]
        %v1071 = vld [vmem:[#allocation9 + $0xd0] sm:$0xff]
        %v1072 = vld [vmem:[#allocation9 + $0xd8] sm:$0xff]
        %v1073 = vld [vmem:[#allocation9 + $0xe0] sm:$0xff]
        %v1074 = vld [vmem:[#allocation9 + $0xe8] sm:$0xff]
        %v1075 = vld [vmem:[#allocation9 + $0xf0] sm:$0xff]
        %v1076 = vld [vmem:[#allocation9 + $0xf8] sm:$0xff]
        %v1109 = vunpack.c.l.b16 %v1045
        %v1110 = vunpack.c.h.b16 %v1045
        %v1111 = vunpack.c.l.b16 %v1046
        %v1112 = vunpack.c.h.b16 %v1046
        %v1113 = vunpack.c.l.b16 %v1047
        %v1114 = vunpack.c.h.b16 %v1047
        %v1115 = vunpack.c.l.b16 %v1048
        %v1116 = vunpack.c.h.b16 %v1048
        %v1117 = vunpack.c.l.b16 %v1049
        %v1118 = vunpack.c.h.b16 %v1049
        %v1119 = vunpack.c.l.b16 %v1050
        %v1120 = vunpack.c.h.b16 %v1050
        %v1121 = vunpack.c.l.b16 %v1051
        %v1122 = vunpack.c.h.b16 %v1051
        %v1123 = vunpack.c.l.b16 %v1052
        %v1124 = vunpack.c.h.b16 %v1052
        %v1125 = vunpack.c.l.b16 %v1053
        %v1126 = vunpack.c.h.b16 %v1053
        %v1127 = vunpack.c.l.b16 %v1054
        %v1128 = vunpack.c.h.b16 %v1054
        %v1129 = vunpack.c.l.b16 %v1055
        %v1130 = vunpack.c.h.b16 %v1055
        %v1131 = vunpack.c.l.b16 %v1056
        %v1132 = vunpack.c.h.b16 %v1056
        %v1133 = vunpack.c.l.b16 %v1057
        %v1134 = vunpack.c.h.b16 %v1057
        %v1135 = vunpack.c.l.b16 %v1058
        %v1136 = vunpack.c.h.b16 %v1058
        %v1137 = vunpack.c.l.b16 %v1059
        %v1138 = vunpack.c.h.b16 %v1059
        %v1139 = vunpack.c.l.b16 %v1060
        %v1140 = vunpack.c.h.b16 %v1060
        %v1141 = vunpack.c.l.b16 %v1061
        %v1142 = vunpack.c.h.b16 %v1061
        %v1143 = vunpack.c.l.b16 %v1062
        %v1144 = vunpack.c.h.b16 %v1062
        %v1145 = vunpack.c.l.b16 %v1063
        %v1146 = vunpack.c.h.b16 %v1063
        %v1147 = vunpack.c.l.b16 %v1064
        %v1148 = vunpack.c.h.b16 %v1064
        %v1149 = vunpack.c.l.b16 %v1065
        %v1150 = vunpack.c.h.b16 %v1065
        %v1151 = vunpack.c.l.b16 %v1066
        %v1152 = vunpack.c.h.b16 %v1066
        %v1153 = vunpack.c.l.b16 %v1067
        %v1154 = vunpack.c.h.b16 %v1067
        %v1155 = vunpack.c.l.b16 %v1068
        %v1156 = vunpack.c.h.b16 %v1068
        %v1157 = vunpack.c.l.b16 %v1069
        %v1158 = vunpack.c.h.b16 %v1069
        %v1159 = vunpack.c.l.b16 %v1070
        %v1160 = vunpack.c.h.b16 %v1070
        %v1161 = vunpack.c.l.b16 %v1071
        %v1162 = vunpack.c.h.b16 %v1071
        %v1163 = vunpack.c.l.b16 %v1072
        %v1164 = vunpack.c.h.b16 %v1072
        %v1165 = vunpack.c.l.b16 %v1073
        %v1166 = vunpack.c.h.b16 %v1073
        %v1167 = vunpack.c.l.b16 %v1074
        %v1168 = vunpack.c.h.b16 %v1074
        %v1169 = vunpack.c.l.b16 %v1075
        %v1170 = vunpack.c.h.b16 %v1075
        %v1171 = vunpack.c.l.b16 %v1076
        %v1172 = vunpack.c.h.b16 %v1076
        %v1173 = vpack.c.b16 %v1111, %v1109
        %v1174 = vpack.c.b16 %v1112, %v1110
        %v1175 = vpack.c.b16 %v1115, %v1113
        %v1176 = vpack.c.b16 %v1116, %v1114
        %v1177 = vpack.c.b16 %v1119, %v1117
        %v1178 = vpack.c.b16 %v1120, %v1118
        %v1179 = vpack.c.b16 %v1123, %v1121
        %v1180 = vpack.c.b16 %v1124, %v1122
        %v1181 = vpack.c.b16 %v1127, %v1125
        %v1182 = vpack.c.b16 %v1128, %v1126
        %v1183 = vpack.c.b16 %v1131, %v1129
        %v1184 = vpack.c.b16 %v1132, %v1130
        %v1185 = vpack.c.b16 %v1135, %v1133
        %v1186 = vpack.c.b16 %v1136, %v1134
        %v1187 = vpack.c.b16 %v1139, %v1137
        %v1188 = vpack.c.b16 %v1140, %v1138
        %v1189 = vpack.c.b16 %v1143, %v1141
        %v1190 = vpack.c.b16 %v1144, %v1142
        %v1191 = vpack.c.b16 %v1147, %v1145
        %v1192 = vpack.c.b16 %v1148, %v1146
        %v1193 = vpack.c.b16 %v1151, %v1149
        %v1194 = vpack.c.b16 %v1152, %v1150
        %v1195 = vpack.c.b16 %v1155, %v1153
        %v1196 = vpack.c.b16 %v1156, %v1154
        %v1197 = vpack.c.b16 %v1159, %v1157
        %v1198 = vpack.c.b16 %v1160, %v1158
        %v1199 = vpack.c.b16 %v1163, %v1161
        %v1200 = vpack.c.b16 %v1164, %v1162
        %v1201 = vpack.c.b16 %v1167, %v1165
        %v1202 = vpack.c.b16 %v1168, %v1166
        %v1203 = vpack.c.b16 %v1171, %v1169
        %v1204 = vpack.c.b16 %v1172, %v1170
        %1237 = vmatprep.subr.bf16.mxu0 %v1188
        %1238 = vmatpush1.bf16.msra.mxu0 %v1187
        %1239 = vmatprep.subr.bf16.mxu0 %v1186
        %1240 = vmatpush1.bf16.msra.mxu0 %v1185
        %1241 = vmatprep.subr.bf16.mxu0 %v1184
        %1242 = vmatpush1.bf16.msra.mxu0 %v1183
        %1243 = vmatprep.subr.bf16.mxu0 %v1182
        %1244 = vmatpush1.bf16.msra.mxu0 %v1181
        %1245 = vmatprep.subr.bf16.mxu0 %v1180
        %1246 = vmatpush1.bf16.msra.mxu0 %v1179
        %1247 = vmatprep.subr.bf16.mxu0 %v1178
        %1248 = vmatpush1.bf16.msra.mxu0 %v1177
        %1249 = vmatprep.subr.bf16.mxu0 %v1176
        %1250 = vmatpush1.bf16.msra.mxu0 %v1175
        %1251 = vmatprep.subr.bf16.mxu0 %v1174
        %1252 = vmatpush1.bf16.msra.mxu0 %v1173
        %1253 = vmatprep.subr.bf16.mxu0 %v1204
        %1254 = vmatpush2.bf16.msra.mxu0 %v1203
        %1255 = vmatprep.subr.bf16.mxu0 %v1202
        %1256 = vmatpush2.bf16.msra.mxu0 %v1201
        %1257 = vmatprep.subr.bf16.mxu0 %v1200
        %1258 = vmatpush2.bf16.msra.mxu0 %v1199
        %1259 = vmatprep.subr.bf16.mxu0 %v1198
        %1260 = vmatpush2.bf16.msra.mxu0 %v1197
        %1261 = vmatprep.subr.bf16.mxu0 %v1196
        %1262 = vmatpush2.bf16.msra.mxu0 %v1195
        %1263 = vmatprep.subr.bf16.mxu0 %v1194
        %1264 = vmatpush2.bf16.msra.mxu0 %v1193
        %1265 = vmatprep.subr.bf16.mxu0 %v1192
        %1266 = vmatpush2.bf16.msra.mxu0 %v1191
        %1267 = vmatprep.subr.bf16.mxu0 %v1190
        %1268 = vmatpush2.bf16.msra.mxu0 %v1189
        %1269 = vmatprep.mubr.bf16.mxu0 %v1014
        %1270 = vmatmul.mubr.bf16.gmra.mxu0 %v1013
        %v1271 = vpop.f32.mrf.mxu0
        %v1272 = vadd.f32 0.0, %v1271
        %v1273 = vpop.f32.mrf.mxu0
        %v1274 = vadd.f32 0.0, %v1273
        %v1275 = vpop.f32.mrf.mxu0
        %v1276 = vadd.f32 0.0, %v1275
        %v1277 = vpop.f32.mrf.mxu0
        %v1278 = vadd.f32 0.0, %v1277
        %1279 = vmatprep.mubr.bf16.mxu0 %v1016
        %1280 = vmatmul.mubr.bf16.gmra.mxu0 %v1015
        %v1281 = vpop.f32.mrf.mxu0
        %v1282 = vadd.f32 0.0, %v1281
        %v1283 = vpop.f32.mrf.mxu0
        %v1284 = vadd.f32 0.0, %v1283
        %v1285 = vpop.f32.mrf.mxu0
        %v1286 = vadd.f32 0.0, %v1285
        %v1287 = vpop.f32.mrf.mxu0
        %v1288 = vadd.f32 0.0, %v1287
        %1289 = vmatprep.mubr.bf16.mxu0 %v1018
        %1290 = vmatmul.mubr.bf16.gmra.mxu0 %v1017
        %v1291 = vpop.f32.mrf.mxu0
        %v1292 = vadd.f32 0.0, %v1291
        %v1293 = vpop.f32.mrf.mxu0
        %v1294 = vadd.f32 0.0, %v1293
        %v1295 = vpop.f32.mrf.mxu0
        %v1296 = vadd.f32 0.0, %v1295
        %v1297 = vpop.f32.mrf.mxu0
        %v1298 = vadd.f32 0.0, %v1297
        %1299 = vmatprep.mubr.bf16.mxu0 %v1020
        %1300 = vmatmul.mubr.bf16.gmra.mxu0 %v1019
        %v1301 = vpop.f32.mrf.mxu0
        %v1302 = vadd.f32 0.0, %v1301
        %v1303 = vpop.f32.mrf.mxu0
        %v1304 = vadd.f32 0.0, %v1303
        %v1305 = vpop.f32.mrf.mxu0
        %v1306 = vadd.f32 0.0, %v1305
        %v1307 = vpop.f32.mrf.mxu0
        %v1308 = vadd.f32 0.0, %v1307
        %1309 = vmatprep.mubr.bf16.mxu0 %v1022
        %1310 = vmatmul.mubr.bf16.gmra.mxu0 %v1021
        %v1311 = vpop.f32.mrf.mxu0
        %v1312 = vadd.f32 0.0, %v1311
        %v1313 = vpop.f32.mrf.mxu0
        %v1314 = vadd.f32 0.0, %v1313
        %v1315 = vpop.f32.mrf.mxu0
        %v1316 = vadd.f32 0.0, %v1315
        %v1317 = vpop.f32.mrf.mxu0
        %v1318 = vadd.f32 0.0, %v1317
        %1319 = vmatprep.mubr.bf16.mxu0 %v1024
        %1320 = vmatmul.mubr.bf16.gmra.mxu0 %v1023
        %v1321 = vpop.f32.mrf.mxu0
        %v1322 = vadd.f32 0.0, %v1321
        %v1323 = vpop.f32.mrf.mxu0
        %v1324 = vadd.f32 0.0, %v1323
        %v1325 = vpop.f32.mrf.mxu0
        %v1326 = vadd.f32 0.0, %v1325
        %v1327 = vpop.f32.mrf.mxu0
        %v1328 = vadd.f32 0.0, %v1327
        %1329 = vmatprep.mubr.bf16.mxu0 %v1026
        %1330 = vmatmul.mubr.bf16.gmra.mxu0 %v1025
        %v1331 = vpop.f32.mrf.mxu0
        %v1332 = vadd.f32 0.0, %v1331
        %v1333 = vpop.f32.mrf.mxu0
        %v1334 = vadd.f32 0.0, %v1333
        %v1335 = vpop.f32.mrf.mxu0
        %v1336 = vadd.f32 0.0, %v1335
        %v1337 = vpop.f32.mrf.mxu0
        %v1338 = vadd.f32 0.0, %v1337
        %1339 = vmatprep.mubr.bf16.mxu0 %v1028
        %1340 = vmatmul.mubr.bf16.gmra.mxu0 %v1027
        %v1341 = vpop.f32.mrf.mxu0
        %v1342 = vadd.f32 0.0, %v1341
        %v1343 = vpop.f32.mrf.mxu0
        %v1344 = vadd.f32 0.0, %v1343
        %v1345 = vpop.f32.mrf.mxu0
        %v1346 = vadd.f32 0.0, %v1345
        %v1347 = vpop.f32.mrf.mxu0
        %v1348 = vadd.f32 0.0, %v1347
        %1349 = vmatprep.mubr.bf16.mxu0 %v1030
        %1350 = vmatmul.mubr.bf16.gmra.mxu0 %v1029
        %v1351 = vpop.f32.mrf.mxu0
        %v1352 = vadd.f32 0.0, %v1351
        %v1353 = vpop.f32.mrf.mxu0
        %v1354 = vadd.f32 0.0, %v1353
        %v1355 = vpop.f32.mrf.mxu0
        %v1356 = vadd.f32 0.0, %v1355
        %v1357 = vpop.f32.mrf.mxu0
        %v1358 = vadd.f32 0.0, %v1357
        %1359 = vmatprep.mubr.bf16.mxu0 %v1032
        %1360 = vmatmul.mubr.bf16.gmra.mxu0 %v1031
        %v1361 = vpop.f32.mrf.mxu0
        %v1362 = vadd.f32 0.0, %v1361
        %v1363 = vpop.f32.mrf.mxu0
        %v1364 = vadd.f32 0.0, %v1363
        %v1365 = vpop.f32.mrf.mxu0
        %v1366 = vadd.f32 0.0, %v1365
        %v1367 = vpop.f32.mrf.mxu0
        %v1368 = vadd.f32 0.0, %v1367
        %1369 = vmatprep.mubr.bf16.mxu0 %v1034
        %1370 = vmatmul.mubr.bf16.gmra.mxu0 %v1033
        %v1371 = vpop.f32.mrf.mxu0
        %v1372 = vadd.f32 0.0, %v1371
        %v1373 = vpop.f32.mrf.mxu0
        %v1374 = vadd.f32 0.0, %v1373
        %v1375 = vpop.f32.mrf.mxu0
        %v1376 = vadd.f32 0.0, %v1375
        %v1377 = vpop.f32.mrf.mxu0
        %v1378 = vadd.f32 0.0, %v1377
        %1379 = vmatprep.mubr.bf16.mxu0 %v1036
        %1380 = vmatmul.mubr.bf16.gmra.mxu0 %v1035
        %v1381 = vpop.f32.mrf.mxu0
        %v1382 = vadd.f32 0.0, %v1381
        %v1383 = vpop.f32.mrf.mxu0
        %v1384 = vadd.f32 0.0, %v1383
        %v1385 = vpop.f32.mrf.mxu0
        %v1386 = vadd.f32 0.0, %v1385
        %v1387 = vpop.f32.mrf.mxu0
        %v1388 = vadd.f32 0.0, %v1387
        %1389 = vmatprep.mubr.bf16.mxu0 %v1038
        %1390 = vmatmul.mubr.bf16.gmra.mxu0 %v1037
        %v1391 = vpop.f32.mrf.mxu0
        %v1392 = vadd.f32 0.0, %v1391
        %v1393 = vpop.f32.mrf.mxu0
        %v1394 = vadd.f32 0.0, %v1393
        %v1395 = vpop.f32.mrf.mxu0
        %v1396 = vadd.f32 0.0, %v1395
        %v1397 = vpop.f32.mrf.mxu0
        %v1398 = vadd.f32 0.0, %v1397
        %1399 = vmatprep.mubr.bf16.mxu0 %v1040
        %1400 = vmatmul.mubr.bf16.gmra.mxu0 %v1039
        %v1401 = vpop.f32.mrf.mxu0
        %v1402 = vadd.f32 0.0, %v1401
        %v1403 = vpop.f32.mrf.mxu0
        %v1404 = vadd.f32 0.0, %v1403
        %v1405 = vpop.f32.mrf.mxu0
        %v1406 = vadd.f32 0.0, %v1405
        %v1407 = vpop.f32.mrf.mxu0
        %v1408 = vadd.f32 0.0, %v1407
        %1409 = vmatprep.mubr.bf16.mxu0 %v1042
        %1410 = vmatmul.mubr.bf16.gmra.mxu0 %v1041
        %v1411 = vpop.f32.mrf.mxu0
        %v1412 = vadd.f32 0.0, %v1411
        %v1413 = vpop.f32.mrf.mxu0
        %v1414 = vadd.f32 0.0, %v1413
        %v1415 = vpop.f32.mrf.mxu0
        %v1416 = vadd.f32 0.0, %v1415
        %v1417 = vpop.f32.mrf.mxu0
        %v1418 = vadd.f32 0.0, %v1417
        %1419 = vmatprep.mubr.bf16.mxu0 %v1044
        %1420 = vmatmul.mubr.bf16.gmra.mxu0 %v1043
        %v1421 = vpop.f32.mrf.mxu0
        %v1422 = vadd.f32 0.0, %v1421
        %v1423 = vpop.f32.mrf.mxu0
        %v1424 = vadd.f32 0.0, %v1423
        %v1425 = vpop.f32.mrf.mxu0
        %v1426 = vadd.f32 0.0, %v1425
        %v1427 = vpop.f32.mrf.mxu0
        %v1428 = vadd.f32 0.0, %v1427
        %1429 = vdwg.mxu0
        %v1430 = vpack.c.bf16 %v1276, %v1272
        %v1431 = vpack.c.bf16 %v1278, %v1274
        %v1432 = vpack.c.bf16 %v1286, %v1282
        %v1433 = vpack.c.bf16 %v1288, %v1284
        %v1434 = vpack.c.bf16 %v1296, %v1292
        %v1435 = vpack.c.bf16 %v1298, %v1294
        %v1436 = vpack.c.bf16 %v1306, %v1302
        %v1437 = vpack.c.bf16 %v1308, %v1304
        %v1438 = vpack.c.bf16 %v1316, %v1312
        %v1439 = vpack.c.bf16 %v1318, %v1314
        %v1440 = vpack.c.bf16 %v1326, %v1322
        %v1441 = vpack.c.bf16 %v1328, %v1324
        %v1442 = vpack.c.bf16 %v1336, %v1332
        %v1443 = vpack.c.bf16 %v1338, %v1334
        %v1444 = vpack.c.bf16 %v1346, %v1342
        %v1445 = vpack.c.bf16 %v1348, %v1344
        %v1446 = vpack.c.bf16 %v1356, %v1352
        %v1447 = vpack.c.bf16 %v1358, %v1354
        %v1448 = vpack.c.bf16 %v1366, %v1362
        %v1449 = vpack.c.bf16 %v1368, %v1364
        %v1450 = vpack.c.bf16 %v1376, %v1372
        %v1451 = vpack.c.bf16 %v1378, %v1374
        %v1452 = vpack.c.bf16 %v1386, %v1382
        %v1453 = vpack.c.bf16 %v1388, %v1384
        %v1454 = vpack.c.bf16 %v1396, %v1392
        %v1455 = vpack.c.bf16 %v1398, %v1394
        %v1456 = vpack.c.bf16 %v1406, %v1402
        %v1457 = vpack.c.bf16 %v1408, %v1404
        %v1458 = vpack.c.bf16 %v1416, %v1412
        %v1459 = vpack.c.bf16 %v1418, %v1414
        %v1460 = vpack.c.bf16 %v1426, %v1422
        %v1461 = vpack.c.bf16 %v1428, %v1424
        %v1462 = vld [vmem:[#allocation7] sm:$0xff]
        %v1463 = vld [vmem:[#allocation7 + $0x8] sm:$0xff]
        %v1464 = vld [vmem:[#allocation7 + $0x10] sm:$0xff]
        %v1465 = vld [vmem:[#allocation7 + $0x18] sm:$0xff]
        %v1466 = vld [vmem:[#allocation7 + $0x20] sm:$0xff]
        %v1467 = vld [vmem:[#allocation7 + $0x28] sm:$0xff]
        %v1468 = vld [vmem:[#allocation7 + $0x30] sm:$0xff]
        %v1469 = vld [vmem:[#allocation7 + $0x38] sm:$0xff]
        %v1470 = vld [vmem:[#allocation7 + $0x40] sm:$0xff]
        %v1471 = vld [vmem:[#allocation7 + $0x48] sm:$0xff]
        %v1472 = vld [vmem:[#allocation7 + $0x50] sm:$0xff]
        %v1473 = vld [vmem:[#allocation7 + $0x58] sm:$0xff]
        %v1474 = vld [vmem:[#allocation7 + $0x60] sm:$0xff]
        %v1475 = vld [vmem:[#allocation7 + $0x68] sm:$0xff]
        %v1476 = vld [vmem:[#allocation7 + $0x70] sm:$0xff]
        %v1477 = vld [vmem:[#allocation7 + $0x78] sm:$0xff]
        %v1478 = vld [vmem:[#allocation7 + $0x80] sm:$0xff]
        %v1479 = vld [vmem:[#allocation7 + $0x88] sm:$0xff]
        %v1480 = vld [vmem:[#allocation7 + $0x90] sm:$0xff]
        %v1481 = vld [vmem:[#allocation7 + $0x98] sm:$0xff]
        %v1482 = vld [vmem:[#allocation7 + $0xa0] sm:$0xff]
        %v1483 = vld [vmem:[#allocation7 + $0xa8] sm:$0xff]
        %v1484 = vld [vmem:[#allocation7 + $0xb0] sm:$0xff]
        %v1485 = vld [vmem:[#allocation7 + $0xb8] sm:$0xff]
        %v1486 = vld [vmem:[#allocation7 + $0xc0] sm:$0xff]
        %v1487 = vld [vmem:[#allocation7 + $0xc8] sm:$0xff]
        %v1488 = vld [vmem:[#allocation7 + $0xd0] sm:$0xff]
        %v1489 = vld [vmem:[#allocation7 + $0xd8] sm:$0xff]
        %v1490 = vld [vmem:[#allocation7 + $0xe0] sm:$0xff]
        %v1491 = vld [vmem:[#allocation7 + $0xe8] sm:$0xff]
        %v1492 = vld [vmem:[#allocation7 + $0xf0] sm:$0xff]
        %v1493 = vld [vmem:[#allocation7 + $0xf8] sm:$0xff]
        %v1526 = vunpack.c.l.b16 %v1462
        %v1527 = vunpack.c.h.b16 %v1462
        %v1528 = vunpack.c.l.b16 %v1463
        %v1529 = vunpack.c.h.b16 %v1463
        %v1530 = vunpack.c.l.b16 %v1464
        %v1531 = vunpack.c.h.b16 %v1464
        %v1532 = vunpack.c.l.b16 %v1465
        %v1533 = vunpack.c.h.b16 %v1465
        %v1534 = vunpack.c.l.b16 %v1466
        %v1535 = vunpack.c.h.b16 %v1466
        %v1536 = vunpack.c.l.b16 %v1467
        %v1537 = vunpack.c.h.b16 %v1467
        %v1538 = vunpack.c.l.b16 %v1468
        %v1539 = vunpack.c.h.b16 %v1468
        %v1540 = vunpack.c.l.b16 %v1469
        %v1541 = vunpack.c.h.b16 %v1469
        %v1542 = vunpack.c.l.b16 %v1470
        %v1543 = vunpack.c.h.b16 %v1470
        %v1544 = vunpack.c.l.b16 %v1471
        %v1545 = vunpack.c.h.b16 %v1471
        %v1546 = vunpack.c.l.b16 %v1472
        %v1547 = vunpack.c.h.b16 %v1472
        %v1548 = vunpack.c.l.b16 %v1473
        %v1549 = vunpack.c.h.b16 %v1473
        %v1550 = vunpack.c.l.b16 %v1474
        %v1551 = vunpack.c.h.b16 %v1474
        %v1552 = vunpack.c.l.b16 %v1475
        %v1553 = vunpack.c.h.b16 %v1475
        %v1554 = vunpack.c.l.b16 %v1476
        %v1555 = vunpack.c.h.b16 %v1476
        %v1556 = vunpack.c.l.b16 %v1477
        %v1557 = vunpack.c.h.b16 %v1477
        %v1558 = vunpack.c.l.b16 %v1478
        %v1559 = vunpack.c.h.b16 %v1478
        %v1560 = vunpack.c.l.b16 %v1479
        %v1561 = vunpack.c.h.b16 %v1479
        %v1562 = vunpack.c.l.b16 %v1480
        %v1563 = vunpack.c.h.b16 %v1480
        %v1564 = vunpack.c.l.b16 %v1481
        %v1565 = vunpack.c.h.b16 %v1481
        %v1566 = vunpack.c.l.b16 %v1482
        %v1567 = vunpack.c.h.b16 %v1482
        %v1568 = vunpack.c.l.b16 %v1483
        %v1569 = vunpack.c.h.b16 %v1483
        %v1570 = vunpack.c.l.b16 %v1484
        %v1571 = vunpack.c.h.b16 %v1484
        %v1572 = vunpack.c.l.b16 %v1485
        %v1573 = vunpack.c.h.b16 %v1485
        %v1574 = vunpack.c.l.b16 %v1486
        %v1575 = vunpack.c.h.b16 %v1486
        %v1576 = vunpack.c.l.b16 %v1487
        %v1577 = vunpack.c.h.b16 %v1487
        %v1578 = vunpack.c.l.b16 %v1488
        %v1579 = vunpack.c.h.b16 %v1488
        %v1580 = vunpack.c.l.b16 %v1489
        %v1581 = vunpack.c.h.b16 %v1489
        %v1582 = vunpack.c.l.b16 %v1490
        %v1583 = vunpack.c.h.b16 %v1490
        %v1584 = vunpack.c.l.b16 %v1491
        %v1585 = vunpack.c.h.b16 %v1491
        %v1586 = vunpack.c.l.b16 %v1492
        %v1587 = vunpack.c.h.b16 %v1492
        %v1588 = vunpack.c.l.b16 %v1493
        %v1589 = vunpack.c.h.b16 %v1493
        %v1590 = vpack.c.b16 %v1528, %v1526
        %v1591 = vpack.c.b16 %v1529, %v1527
        %v1592 = vpack.c.b16 %v1532, %v1530
        %v1593 = vpack.c.b16 %v1533, %v1531
        %v1594 = vpack.c.b16 %v1536, %v1534
        %v1595 = vpack.c.b16 %v1537, %v1535
        %v1596 = vpack.c.b16 %v1540, %v1538
        %v1597 = vpack.c.b16 %v1541, %v1539
        %v1598 = vpack.c.b16 %v1544, %v1542
        %v1599 = vpack.c.b16 %v1545, %v1543
        %v1600 = vpack.c.b16 %v1548, %v1546
        %v1601 = vpack.c.b16 %v1549, %v1547
        %v1602 = vpack.c.b16 %v1552, %v1550
        %v1603 = vpack.c.b16 %v1553, %v1551
        %v1604 = vpack.c.b16 %v1556, %v1554
        %v1605 = vpack.c.b16 %v1557, %v1555
        %v1606 = vpack.c.b16 %v1560, %v1558
        %v1607 = vpack.c.b16 %v1561, %v1559
        %v1608 = vpack.c.b16 %v1564, %v1562
        %v1609 = vpack.c.b16 %v1565, %v1563
        %v1610 = vpack.c.b16 %v1568, %v1566
        %v1611 = vpack.c.b16 %v1569, %v1567
        %v1612 = vpack.c.b16 %v1572, %v1570
        %v1613 = vpack.c.b16 %v1573, %v1571
        %v1614 = vpack.c.b16 %v1576, %v1574
        %v1615 = vpack.c.b16 %v1577, %v1575
        %v1616 = vpack.c.b16 %v1580, %v1578
        %v1617 = vpack.c.b16 %v1581, %v1579
        %v1618 = vpack.c.b16 %v1584, %v1582
        %v1619 = vpack.c.b16 %v1585, %v1583
        %v1620 = vpack.c.b16 %v1588, %v1586
        %v1621 = vpack.c.b16 %v1589, %v1587
        %1654 = vmatprep.subr.bf16.mxu0 %v1605
        %1655 = vmatpush1.bf16.msra.mxu0 %v1604
        %1656 = vmatprep.subr.bf16.mxu0 %v1603
        %1657 = vmatpush1.bf16.msra.mxu0 %v1602
        %1658 = vmatprep.subr.bf16.mxu0 %v1601
        %1659 = vmatpush1.bf16.msra.mxu0 %v1600
        %1660 = vmatprep.subr.bf16.mxu0 %v1599
        %1661 = vmatpush1.bf16.msra.mxu0 %v1598
        %1662 = vmatprep.subr.bf16.mxu0 %v1597
        %1663 = vmatpush1.bf16.msra.mxu0 %v1596
        %1664 = vmatprep.subr.bf16.mxu0 %v1595
        %1665 = vmatpush1.bf16.msra.mxu0 %v1594
        %1666 = vmatprep.subr.bf16.mxu0 %v1593
        %1667 = vmatpush1.bf16.msra.mxu0 %v1592
        %1668 = vmatprep.subr.bf16.mxu0 %v1591
        %1669 = vmatpush1.bf16.msra.mxu0 %v1590
        %1670 = vmatprep.subr.bf16.mxu0 %v1621
        %1671 = vmatpush2.bf16.msra.mxu0 %v1620
        %1672 = vmatprep.subr.bf16.mxu0 %v1619
        %1673 = vmatpush2.bf16.msra.mxu0 %v1618
        %1674 = vmatprep.subr.bf16.mxu0 %v1617
        %1675 = vmatpush2.bf16.msra.mxu0 %v1616
        %1676 = vmatprep.subr.bf16.mxu0 %v1615
        %1677 = vmatpush2.bf16.msra.mxu0 %v1614
        %1678 = vmatprep.subr.bf16.mxu0 %v1613
        %1679 = vmatpush2.bf16.msra.mxu0 %v1612
        %1680 = vmatprep.subr.bf16.mxu0 %v1611
        %1681 = vmatpush2.bf16.msra.mxu0 %v1610
        %1682 = vmatprep.subr.bf16.mxu0 %v1609
        %1683 = vmatpush2.bf16.msra.mxu0 %v1608
        %1684 = vmatprep.subr.bf16.mxu0 %v1607
        %1685 = vmatpush2.bf16.msra.mxu0 %v1606
        %1686 = vmatprep.mubr.bf16.mxu0 %v1431
        %1687 = vmatmul.mubr.bf16.gmra.mxu0 %v1430
        %v1688 = vpop.f32.mrf.mxu0
        %v1689 = vadd.f32 0.0, %v1688
        %v1690 = vpop.f32.mrf.mxu0
        %v1691 = vadd.f32 0.0, %v1690
        %v1692 = vpop.f32.mrf.mxu0
        %v1693 = vadd.f32 0.0, %v1692
        %v1694 = vpop.f32.mrf.mxu0
        %v1695 = vadd.f32 0.0, %v1694
        %1696 = vmatprep.mubr.bf16.mxu0 %v1433
        %1697 = vmatmul.mubr.bf16.gmra.mxu0 %v1432
        %v1698 = vpop.f32.mrf.mxu0
        %v1699 = vadd.f32 0.0, %v1698
        %v1700 = vpop.f32.mrf.mxu0
        %v1701 = vadd.f32 0.0, %v1700
        %v1702 = vpop.f32.mrf.mxu0
        %v1703 = vadd.f32 0.0, %v1702
        %v1704 = vpop.f32.mrf.mxu0
        %v1705 = vadd.f32 0.0, %v1704
        %1706 = vmatprep.mubr.bf16.mxu0 %v1435
        %1707 = vmatmul.mubr.bf16.gmra.mxu0 %v1434
        %v1708 = vpop.f32.mrf.mxu0
        %v1709 = vadd.f32 0.0, %v1708
        %v1710 = vpop.f32.mrf.mxu0
        %v1711 = vadd.f32 0.0, %v1710
        %v1712 = vpop.f32.mrf.mxu0
        %v1713 = vadd.f32 0.0, %v1712
        %v1714 = vpop.f32.mrf.mxu0
        %v1715 = vadd.f32 0.0, %v1714
        %1716 = vmatprep.mubr.bf16.mxu0 %v1437
        %1717 = vmatmul.mubr.bf16.gmra.mxu0 %v1436
        %v1718 = vpop.f32.mrf.mxu0
        %v1719 = vadd.f32 0.0, %v1718
        %v1720 = vpop.f32.mrf.mxu0
        %v1721 = vadd.f32 0.0, %v1720
        %v1722 = vpop.f32.mrf.mxu0
        %v1723 = vadd.f32 0.0, %v1722
        %v1724 = vpop.f32.mrf.mxu0
        %v1725 = vadd.f32 0.0, %v1724
        %1726 = vmatprep.mubr.bf16.mxu0 %v1439
        %1727 = vmatmul.mubr.bf16.gmra.mxu0 %v1438
        %v1728 = vpop.f32.mrf.mxu0
        %v1729 = vadd.f32 0.0, %v1728
        %v1730 = vpop.f32.mrf.mxu0
        %v1731 = vadd.f32 0.0, %v1730
        %v1732 = vpop.f32.mrf.mxu0
        %v1733 = vadd.f32 0.0, %v1732
        %v1734 = vpop.f32.mrf.mxu0
        %v1735 = vadd.f32 0.0, %v1734
        %1736 = vmatprep.mubr.bf16.mxu0 %v1441
        %1737 = vmatmul.mubr.bf16.gmra.mxu0 %v1440
        %v1738 = vpop.f32.mrf.mxu0
        %v1739 = vadd.f32 0.0, %v1738
        %v1740 = vpop.f32.mrf.mxu0
        %v1741 = vadd.f32 0.0, %v1740
        %v1742 = vpop.f32.mrf.mxu0
        %v1743 = vadd.f32 0.0, %v1742
        %v1744 = vpop.f32.mrf.mxu0
        %v1745 = vadd.f32 0.0, %v1744
        %1746 = vmatprep.mubr.bf16.mxu0 %v1443
        %1747 = vmatmul.mubr.bf16.gmra.mxu0 %v1442
        %v1748 = vpop.f32.mrf.mxu0
        %v1749 = vadd.f32 0.0, %v1748
        %v1750 = vpop.f32.mrf.mxu0
        %v1751 = vadd.f32 0.0, %v1750
        %v1752 = vpop.f32.mrf.mxu0
        %v1753 = vadd.f32 0.0, %v1752
        %v1754 = vpop.f32.mrf.mxu0
        %v1755 = vadd.f32 0.0, %v1754
        %1756 = vmatprep.mubr.bf16.mxu0 %v1445
        %1757 = vmatmul.mubr.bf16.gmra.mxu0 %v1444
        %v1758 = vpop.f32.mrf.mxu0
        %v1759 = vadd.f32 0.0, %v1758
        %v1760 = vpop.f32.mrf.mxu0
        %v1761 = vadd.f32 0.0, %v1760
        %v1762 = vpop.f32.mrf.mxu0
        %v1763 = vadd.f32 0.0, %v1762
        %v1764 = vpop.f32.mrf.mxu0
        %v1765 = vadd.f32 0.0, %v1764
        %1766 = vmatprep.mubr.bf16.mxu0 %v1447
        %1767 = vmatmul.mubr.bf16.gmra.mxu0 %v1446
        %v1768 = vpop.f32.mrf.mxu0
        %v1769 = vadd.f32 0.0, %v1768
        %v1770 = vpop.f32.mrf.mxu0
        %v1771 = vadd.f32 0.0, %v1770
        %v1772 = vpop.f32.mrf.mxu0
        %v1773 = vadd.f32 0.0, %v1772
        %v1774 = vpop.f32.mrf.mxu0
        %v1775 = vadd.f32 0.0, %v1774
        %1776 = vmatprep.mubr.bf16.mxu0 %v1449
        %1777 = vmatmul.mubr.bf16.gmra.mxu0 %v1448
        %v1778 = vpop.f32.mrf.mxu0
        %v1779 = vadd.f32 0.0, %v1778
        %v1780 = vpop.f32.mrf.mxu0
        %v1781 = vadd.f32 0.0, %v1780
        %v1782 = vpop.f32.mrf.mxu0
        %v1783 = vadd.f32 0.0, %v1782
        %v1784 = vpop.f32.mrf.mxu0
        %v1785 = vadd.f32 0.0, %v1784
        %1786 = vmatprep.mubr.bf16.mxu0 %v1451
        %1787 = vmatmul.mubr.bf16.gmra.mxu0 %v1450
        %v1788 = vpop.f32.mrf.mxu0
        %v1789 = vadd.f32 0.0, %v1788
        %v1790 = vpop.f32.mrf.mxu0
        %v1791 = vadd.f32 0.0, %v1790
        %v1792 = vpop.f32.mrf.mxu0
        %v1793 = vadd.f32 0.0, %v1792
        %v1794 = vpop.f32.mrf.mxu0
        %v1795 = vadd.f32 0.0, %v1794
        %1796 = vmatprep.mubr.bf16.mxu0 %v1453
        %1797 = vmatmul.mubr.bf16.gmra.mxu0 %v1452
        %v1798 = vpop.f32.mrf.mxu0
        %v1799 = vadd.f32 0.0, %v1798
        %v1800 = vpop.f32.mrf.mxu0
        %v1801 = vadd.f32 0.0, %v1800
        %v1802 = vpop.f32.mrf.mxu0
        %v1803 = vadd.f32 0.0, %v1802
        %v1804 = vpop.f32.mrf.mxu0
        %v1805 = vadd.f32 0.0, %v1804
        %1806 = vmatprep.mubr.bf16.mxu0 %v1455
        %1807 = vmatmul.mubr.bf16.gmra.mxu0 %v1454
        %v1808 = vpop.f32.mrf.mxu0
        %v1809 = vadd.f32 0.0, %v1808
        %v1810 = vpop.f32.mrf.mxu0
        %v1811 = vadd.f32 0.0, %v1810
        %v1812 = vpop.f32.mrf.mxu0
        %v1813 = vadd.f32 0.0, %v1812
        %v1814 = vpop.f32.mrf.mxu0
        %v1815 = vadd.f32 0.0, %v1814
        %1816 = vmatprep.mubr.bf16.mxu0 %v1457
        %1817 = vmatmul.mubr.bf16.gmra.mxu0 %v1456
        %v1818 = vpop.f32.mrf.mxu0
        %v1819 = vadd.f32 0.0, %v1818
        %v1820 = vpop.f32.mrf.mxu0
        %v1821 = vadd.f32 0.0, %v1820
        %v1822 = vpop.f32.mrf.mxu0
        %v1823 = vadd.f32 0.0, %v1822
        %v1824 = vpop.f32.mrf.mxu0
        %v1825 = vadd.f32 0.0, %v1824
        %1826 = vmatprep.mubr.bf16.mxu0 %v1459
        %1827 = vmatmul.mubr.bf16.gmra.mxu0 %v1458
        %v1828 = vpop.f32.mrf.mxu0
        %v1829 = vadd.f32 0.0, %v1828
        %v1830 = vpop.f32.mrf.mxu0
        %v1831 = vadd.f32 0.0, %v1830
        %v1832 = vpop.f32.mrf.mxu0
        %v1833 = vadd.f32 0.0, %v1832
        %v1834 = vpop.f32.mrf.mxu0
        %v1835 = vadd.f32 0.0, %v1834
        %1836 = vmatprep.mubr.bf16.mxu0 %v1461
        %1837 = vmatmul.mubr.bf16.gmra.mxu0 %v1460
        %v1838 = vpop.f32.mrf.mxu0
        %v1839 = vadd.f32 0.0, %v1838
        %v1840 = vpop.f32.mrf.mxu0
        %v1841 = vadd.f32 0.0, %v1840
        %v1842 = vpop.f32.mrf.mxu0
        %v1843 = vadd.f32 0.0, %v1842
        %v1844 = vpop.f32.mrf.mxu0
        %v1845 = vadd.f32 0.0, %v1844
        %1846 = vdwg.mxu0
        %1847 = vst [vmem:[%s303] sm:$0xff] %v1689
        %1848 = vst [vmem:[%s303 + $0x8] sm:$0xff] %v1691
        %1849 = vst [vmem:[%s303 + $0x10] sm:$0xff] %v1693
        %1850 = vst [vmem:[%s303 + $0x18] sm:$0xff] %v1695
        %1851 = vst [vmem:[%s303 + $0x20] sm:$0xff] %v1699
        %1852 = vst [vmem:[%s303 + $0x28] sm:$0xff] %v1701
        %1853 = vst [vmem:[%s303 + $0x30] sm:$0xff] %v1703
        %1854 = vst [vmem:[%s303 + $0x38] sm:$0xff] %v1705
        %1855 = vst [vmem:[%s303 + $0x40] sm:$0xff] %v1709
        %1856 = vst [vmem:[%s303 + $0x48] sm:$0xff] %v1711
        %1857 = vst [vmem:[%s303 + $0x50] sm:$0xff] %v1713
        %1858 = vst [vmem:[%s303 + $0x58] sm:$0xff] %v1715
        %1859 = vst [vmem:[%s303 + $0x60] sm:$0xff] %v1719
        %1860 = vst [vmem:[%s303 + $0x68] sm:$0xff] %v1721
        %1861 = vst [vmem:[%s303 + $0x70] sm:$0xff] %v1723
        %1862 = vst [vmem:[%s303 + $0x78] sm:$0xff] %v1725
        %1863 = vst [vmem:[%s303 + $0x80] sm:$0xff] %v1729
        %1864 = vst [vmem:[%s303 + $0x88] sm:$0xff] %v1731
        %1865 = vst [vmem:[%s303 + $0x90] sm:$0xff] %v1733
        %1866 = vst [vmem:[%s303 + $0x98] sm:$0xff] %v1735
        %1867 = vst [vmem:[%s303 + $0xa0] sm:$0xff] %v1739
        %1868 = vst [vmem:[%s303 + $0xa8] sm:$0xff] %v1741
        %1869 = vst [vmem:[%s303 + $0xb0] sm:$0xff] %v1743
        %1870 = vst [vmem:[%s303 + $0xb8] sm:$0xff] %v1745
        %1871 = vst [vmem:[%s303 + $0xc0] sm:$0xff] %v1749
        %1872 = vst [vmem:[%s303 + $0xc8] sm:$0xff] %v1751
        %1873 = vst [vmem:[%s303 + $0xd0] sm:$0xff] %v1753
        %1874 = vst [vmem:[%s303 + $0xd8] sm:$0xff] %v1755
        %1875 = vst [vmem:[%s303 + $0xe0] sm:$0xff] %v1759
        %1876 = vst [vmem:[%s303 + $0xe8] sm:$0xff] %v1761
        %1877 = vst [vmem:[%s303 + $0xf0] sm:$0xff] %v1763
        %1878 = vst [vmem:[%s303 + $0xf8] sm:$0xff] %v1765
        %1879 = vst [vmem:[%s303 + $0x100] sm:$0xff] %v1769
        %1880 = vst [vmem:[%s303 + $0x108] sm:$0xff] %v1771
        %1881 = vst [vmem:[%s303 + $0x110] sm:$0xff] %v1773
        %1882 = vst [vmem:[%s303 + $0x118] sm:$0xff] %v1775
        %1883 = vst [vmem:[%s303 + $0x120] sm:$0xff] %v1779
        %1884 = vst [vmem:[%s303 + $0x128] sm:$0xff] %v1781
        %1885 = vst [vmem:[%s303 + $0x130] sm:$0xff] %v1783
        %1886 = vst [vmem:[%s303 + $0x138] sm:$0xff] %v1785
        %1887 = vst [vmem:[%s303 + $0x140] sm:$0xff] %v1789
        %1888 = vst [vmem:[%s303 + $0x148] sm:$0xff] %v1791
        %1889 = vst [vmem:[%s303 + $0x150] sm:$0xff] %v1793
        %1890 = vst [vmem:[%s303 + $0x158] sm:$0xff] %v1795
        %1891 = vst [vmem:[%s303 + $0x160] sm:$0xff] %v1799
        %1892 = vst [vmem:[%s303 + $0x168] sm:$0xff] %v1801
        %1893 = vst [vmem:[%s303 + $0x170] sm:$0xff] %v1803
        %1894 = vst [vmem:[%s303 + $0x178] sm:$0xff] %v1805
        %1895 = vst [vmem:[%s303 + $0x180] sm:$0xff] %v1809
        %1896 = vst [vmem:[%s303 + $0x188] sm:$0xff] %v1811
        %1897 = vst [vmem:[%s303 + $0x190] sm:$0xff] %v1813
        %1898 = vst [vmem:[%s303 + $0x198] sm:$0xff] %v1815
        %1899 = vst [vmem:[%s303 + $0x1a0] sm:$0xff] %v1819
        %1900 = vst [vmem:[%s303 + $0x1a8] sm:$0xff] %v1821
        %1901 = vst [vmem:[%s303 + $0x1b0] sm:$0xff] %v1823
        %1902 = vst [vmem:[%s303 + $0x1b8] sm:$0xff] %v1825
        %1903 = vst [vmem:[%s303 + $0x1c0] sm:$0xff] %v1829
        %1904 = vst [vmem:[%s303 + $0x1c8] sm:$0xff] %v1831
        %1905 = vst [vmem:[%s303 + $0x1d0] sm:$0xff] %v1833
        %1906 = vst [vmem:[%s303 + $0x1d8] sm:$0xff] %v1835
        %1907 = vst [vmem:[%s303 + $0x1e0] sm:$0xff] %v1839
        %1908 = vst [vmem:[%s303 + $0x1e8] sm:$0xff] %v1841
        %1909 = vst [vmem:[%s303 + $0x1f0] sm:$0xff] %v1843
        %1910 = vst [vmem:[%s303 + $0x1f8] sm:$0xff] %v1845
        %s1911 = sand.u32 %s144, 1
        %s1912 = scalar_lea.sflag [#allocation6], %s1911
        %s1913 = sand.u32 %s144, 1
        %s1914 = smul.addr %s1913, 512
        %s1915 = scalar_lea.vmem [#allocation13], %s1914
        // Predicated region
        $region61: #{tpu_custom_call.1} parent=39 // pred_check
          %p1916 = pneg %p154
        $region62: #{tpu_custom_call.1} parent=39 // pred_check_branch
          %1918 = sbr.rel (%p1916) target = $region64
        $region63: #{tpu_custom_call.1} parent=39 // pred_region
          %s1919 = smul.u32 32, %s26
          %s1921 = ssub.s32 8192, 8192
          %1922 = vsyncadd %s1912, %s1921
          %s1923 = smul.addr %s1919, 2
          %s1924 = smul.addr %s1923, 128
          %s1925 = scalar_lea.hbm %s6, %s1924
          %s1926 = sshll.u32 %s1915, 4
          %s1927 = int_to_ptr.vmem [resolvable:$true] %s1926
          %1932 = dma.vmem_to_hbm [thread:$0]  %s1927, 8192, %s1925, %s1912, 256, 256, 16
        $region64: #{tpu_custom_call.1} parent=39 // pred_fallthru
          _
      $region40: #{tpu_custom_call.1} parent=5 // pred_fallthru
        _
      %p1933 = scmp.le.s32.totalorder 2, %s21
      // Predicated region
      $region65: #{tpu_custom_call.1} parent=5 // pred_check
        %p1934 = pneg %p1933
      $region66: #{tpu_custom_call.1} parent=5 // pred_check_branch
        %1936 = sbr.rel (%p1934) target = $region68
      $region67: #{tpu_custom_call.1} parent=5 // pred_region
        %s1937 = ssub.s32 %s21, 2
        // Predicated region
        $region69: #{tpu_custom_call.1} parent=67 // pred_check
          %p1938 = pneg %p160
        $region70: #{tpu_custom_call.1} parent=67 // pred_check_branch
          %1940 = sbr.rel (%p1938) target = $region72
        $region71: #{tpu_custom_call.1} parent=67 // pred_region
          %s1941 = sand.u32 %s145, 1
          %s1942 = scalar_lea.sflag [#allocation6], %s1941
          %s1943 = sand.u32 %s145, 1
          %s1944 = smul.addr %s1943, 512
          %s1945 = scalar_lea.vmem [#allocation13], %s1944
          %1946 = dma.done %s1942, 8192
        $region72: #{tpu_custom_call.1} parent=67 // pred_fallthru
          _
      $region68: #{tpu_custom_call.1} parent=5 // pred_fallthru
        _
    $region6: #{tpu_custom_call.1} parent=1 // loop_footer
      %s25 = sadd.s32 1, %s21
    $region7: #{tpu_custom_call.1} parent=1 // loop_footer_branch
      %20 = sbr.rel target = $region3
    $region8: #{tpu_custom_call.1} parent=1 // loop_exit
      _
    %1947 = vsyncpa [#allocation5], 1
    %s1948 = scalar_lea.sflag [#allocation5], 1
    %1949 = vsyncpa %s1948, 1
    %1950 = vsyncpa [#allocation8], 1
    %1951 = vsyncpa [#allocation11], 1
    %1952 = vsyncpa [#allocation6], 1
    %s1953 = scalar_lea.sflag [#allocation6], 1
    %1954 = vsyncpa %s1953, 1

</llo_original>
